<compile_context>
chip_gen: v5e
topology: v5e:2x2
jax: 0.10.0
libtpu: 0.0.40
codegen_flags: <defaults>
</compile_context>

<pallas_src>
import functools
import math

import jax
import jax.numpy as jnp
from jax.experimental import pallas as pl
from jax.experimental.pallas import tpu as pltpu


def _compute_vmem_limit():
    """Generation-aware scoped-VMEM limit: ~3/4 of physical, capped at 100 MiB."""
    try:
        info = pltpu.get_tpu_info()
        cap = int(getattr(info, "vmem_capacity_bytes", 0) or 0)
    except Exception:
        cap = 0
    if cap <= 0:
        cap = 64 << 20          # conservative fallback (v7x-sized)
    return max(32 << 20, min((cap * 3) // 4, 100 << 20))


_VMEM_LIMIT = _compute_vmem_limit()


def _round_up(x, m):
    return ((x + m - 1) // m) * m


def _tile(dim, preferred, align):
    """Largest tile <= preferred dividing dim, preferring 2*align multiples (bf16 sublane
    packing for rows / fuller MXU for lanes), falling back to align, else full dim."""
    if dim <= preferred:
        return dim
    for a in (2 * align, align):
        t = (preferred // a) * a
        while t >= a:
            if dim % t == 0:
                return t
            t -= a
    # TODO(synk): fallback is the un-tiled full dim; callers should pad awkward dims.
    return dim


def _heads_per_group(n_heads, dh):
    """Smallest head group whose concatenated width is >= 128 lanes (unmasked stores)."""
    for g in range(1, n_heads + 1):
        if n_heads % g == 0 and g * dh >= 128:
            return g
    return n_heads


# ----------------------------- Pallas kernels -----------------------------

def _linear_kernel(x_ref, w_ref, b_ref, o_ref, acc_ref, *, activation):
    k = pl.program_id(2)

    @pl.when(k == 0)
    def _init():
        acc_ref[...] = jnp.zeros_like(acc_ref)

    acc_ref[...] += jnp.dot(x_ref[...], w_ref[...],
                            preferred_element_type=jnp.float32)

    @pl.when(k == pl.num_programs(2) - 1)
    def _finalize():
        y = acc_ref[...] + b_ref[...].astype(jnp.float32)
        if activation == "gelu":
            # TODO(synk): PyTorch nn.GELU default is the exact erf form; tanh approx
            # used here for robust Mosaic lowering (~1e-3 deviation).
            y = jax.nn.gelu(y, approximate=True)
        o_ref[...] = y.astype(o_ref.dtype)


def linear(x, w, b, activation="none", out_dtype=None, tm=256, tn=768, tk=768):
    """x: (M, K) @ w: (K, N) + b: (N,) -> (M, N). Tiled, K-accumulated, fused bias/act."""
    M, K = x.shape
    N = w.shape[1]
    out_dtype = out_dtype or x.dtype
    tm = _tile(M, tm, 8)
    tn = _tile(N, tn, 128)
    tk = _tile(K, tk, 128)   # for H<=768 this is full-K: no K loop / single acc pass
    return pl.pallas_call(
        functools.partial(_linear_kernel, activation=activation),
        grid=(M // tm, N // tn, K // tk),
        in_specs=[
            pl.BlockSpec((tm, tk), lambda i, j, k: (i, k)),
            pl.BlockSpec((tk, tn), lambda i, j, k: (k, j)),
            pl.BlockSpec((1, tn), lambda i, j, k: (0, j)),
        ],
        out_specs=pl.BlockSpec((tm, tn), lambda i, j, k: (i, j)),
        out_shape=jax.ShapeDtypeStruct((M, N), out_dtype),
        scratch_shapes=[pltpu.VMEM((tm, tn), jnp.float32)],
        compiler_params=pltpu.CompilerParams(
            dimension_semantics=("parallel", "parallel", "arbitrary"),
            vmem_limit_bytes=_VMEM_LIMIT),
    )(x, w, b.reshape(1, N))


def _linear_add_ln_kernel(x_ref, w_ref, b_ref, r_ref, g_ref, bb_ref, o_ref, acc_ref, *, eps):
    k = pl.program_id(1)

    @pl.when(k == 0)
    def _init():
        acc_ref[...] = jnp.zeros_like(acc_ref)

    acc_ref[...] += jnp.dot(x_ref[...], w_ref[...],
                            preferred_element_type=jnp.float32)

    @pl.when(k == pl.num_programs(1) - 1)
    def _finalize():
        # fused bias + residual add + LayerNorm (output tile spans a full row: tn == H)
        y = acc_ref[...] + b_ref[...].astype(jnp.float32) + r_ref[...].astype(jnp.float32)
        mu = jnp.mean(y, axis=-1, keepdims=True)
        var = jnp.mean(jnp.square(y - mu), axis=-1, keepdims=True)
        yn = (y - mu) * jax.lax.rsqrt(var + eps)
        o_ref[...] = (yn * g_ref[...].astype(jnp.float32)
                      + bb_ref[...].astype(jnp.float32)).astype(o_ref.dtype)


def linear_add_layernorm(x, w, b, res, gamma, beta, eps=1e-5, tm=256, tk=768):
    """LayerNorm(x @ w + b + res) with N = full row; projection, residual and LN fused."""
    M, K = x.shape
    N = w.shape[1]
    tm = _tile(M, tm, 8)
    tk = _tile(K, tk, 128)
    return pl.pallas_call(
        functools.partial(_linear_add_ln_kernel, eps=eps),
        grid=(M // tm, K // tk),
        in_specs=[
            pl.BlockSpec((tm, tk), lambda i, k: (i, k)),
            pl.BlockSpec((tk, N), lambda i, k: (k, 0)),
            pl.BlockSpec((1, N), lambda i, k: (0, 0)),
            pl.BlockSpec((tm, N), lambda i, k: (i, 0)),
            pl.BlockSpec((1, N), lambda i, k: (0, 0)),
            pl.BlockSpec((1, N), lambda i, k: (0, 0)),
        ],
        out_specs=pl.BlockSpec((tm, N), lambda i, k: (i, 0)),
        out_shape=jax.ShapeDtypeStruct((M, N), x.dtype),
        scratch_shapes=[pltpu.VMEM((tm, N), jnp.float32)],
        compiler_params=pltpu.CompilerParams(
            dimension_semantics=("parallel", "arbitrary"),
            vmem_limit_bytes=_VMEM_LIMIT),
    )(x, w, b.reshape(1, N), res, gamma.reshape(1, N), beta.reshape(1, N))


def _attention_kernel(q_ref, kv_ref, m_ref, o_ref, *, n_heads, scale, heads_per_store):
    # q_ref: (tq, 3H) query rows of the packed q|k|v slab (only first H lanes used).
    # kv_ref: (S, 3H) full packed slab for this batch element; m_ref: (1, S) additive mask.
    H = o_ref.shape[-1]
    dh = H // n_heads
    m = m_ref[...].astype(jnp.float32)
    for g0 in range(0, n_heads, heads_per_store):        # static loop; static lane slices
        outs = []
        for h in range(g0, g0 + heads_per_store):
            q = q_ref[:, h * dh:(h + 1) * dh] * scale               # scale folded into q
            k = kv_ref[:, H + h * dh:H + (h + 1) * dh]
            v = kv_ref[:, 2 * H + h * dh:2 * H + (h + 1) * dh]
            s = jax.lax.dot_general(q, k, (((1,), (1,)), ((), ())),
                                    preferred_element_type=jnp.float32)
            s = s + m                                               # f32 mask add
            s = s - jnp.max(s, axis=-1, keepdims=True)
            p = jnp.exp(s)                                          # f32 softmax
            p = p * pl.reciprocal(jnp.sum(p, axis=-1, keepdims=True), approx=True)
            outs.append(jnp.dot(p.astype(v.dtype), v, preferred_element_type=jnp.float32))
        blk = outs[0] if len(outs) == 1 else jnp.concatenate(outs, axis=-1)
        # >=128-lane group written directly into its output slice (no H-wide concat copy).
        o_ref[:, g0 * dh:(g0 + heads_per_store) * dh] = blk.astype(o_ref.dtype)


def attention(qkv, mask, n_heads, tq=256):
    """qkv: (B, S, 3H) packed, mask: (B, 1, S) additive. Returns (B, S, H)."""
    # TODO(synk): for S >= ~2048 switch to a flash-style KV-tiled loop (online max/sum)
    # so the (tq, S) scores / (S, 3H) KV slab stop growing with S.
    B, S, H3 = qkv.shape
    H = H3 // 3
    dh = H // n_heads
    scale = 1.0 / math.sqrt(dh)
    tq = _tile(S, tq, 8)
    hps = _heads_per_group(n_heads, dh)
    return pl.pallas_call(
        functools.partial(_attention_kernel, n_heads=n_heads, scale=scale,
                          heads_per_store=hps),
        grid=(B, S // tq),
        in_specs=[
            pl.BlockSpec((None, tq, H3), lambda b, i: (b, i, 0)),   # query tile (packed)
            pl.BlockSpec((None, S, H3), lambda b, i: (b, 0, 0)),    # full KV slab (resident per b)
            pl.BlockSpec((None, 1, S), lambda b, i: (b, 0, 0)),
        ],
        out_specs=pl.BlockSpec((None, tq, H), lambda b, i: (b, i, 0)),
        out_shape=jax.ShapeDtypeStruct((B, S, H), qkv.dtype),
        compiler_params=pltpu.CompilerParams(
            dimension_semantics=("parallel", "parallel"),
            vmem_limit_bytes=_VMEM_LIMIT),
    )(qkv, qkv, mask)


def _mlm_logits_kernel(h_ref, w_ref, b_ref, z_ref, lse_ref, m_scr, l_scr):
    j = pl.program_id(1)

    @pl.when(j == 0)
    def _init():
        m_scr[...] = jnp.full_like(m_scr, -jnp.inf)
        l_scr[...] = jnp.zeros_like(l_scr)

    z = jnp.dot(h_ref[...], w_ref[...], preferred_element_type=jnp.float32)
    z = z + b_ref[...].astype(jnp.float32)
    z_ref[...] = z.astype(z_ref.dtype)

    # online max / log-sum-exp over the tiled vocab axis
    m_new = jnp.maximum(m_scr[...], jnp.max(z, axis=-1, keepdims=True))
    l_scr[...] = (l_scr[...] * jnp.exp(m_scr[...] - m_new)
                  + jnp.sum(jnp.exp(z - m_new), axis=-1, keepdims=True))
    m_scr[...] = m_new

    @pl.when(j == pl.num_programs(1) - 1)
    def _finalize():
        lse_ref[...] = m_scr[...] + jnp.log(l_scr[...])


def _sub_lse_kernel(z_ref, lse_ref, o_ref):
    o_ref[...] = (z_ref[...].astype(jnp.float32) - lse_ref[...]).astype(o_ref.dtype)


def mlm_head(h, w, b, tm=512, tv=2048, out_dtype=jnp.bfloat16):
    """(M,K)@(K,V)+b followed by log-softmax over V. V is tiled with an online LSE scratch
    (fits v7x VMEM); big tm cuts re-streaming of the (K,V) weight; bf16 log-prob output."""
    M, K = h.shape
    V = w.shape[1]
    # Pad vocab to a lane-friendly multiple so V always tiles cleanly (lane-dense stores).
    lane = 512 if V > 512 else 128
    Vp = _round_up(V, lane)
    if Vp != V:
        w = jnp.pad(w, ((0, 0), (0, Vp - V)))
        b = jnp.pad(b, (0, Vp - V), constant_values=-1e30)   # padded logits ~ -inf
    tm = _tile(M, tm, 8)
    tv = _tile(Vp, tv, 128)

    logits, lse = pl.pallas_call(
        _mlm_logits_kernel,
        grid=(M // tm, Vp // tv),
        in_specs=[
            pl.BlockSpec((tm, K), lambda i, j: (i, 0)),      # full-K hidden tile
            pl.BlockSpec((K, tv), lambda i, j: (0, j)),      # vocab-tiled weight
            pl.BlockSpec((1, tv), lambda i, j: (0, j)),
        ],
        out_specs=[
            pl.BlockSpec((tm, tv), lambda i, j: (i, j)),     # raw logits (bf16)
            pl.BlockSpec((tm, 1), lambda i, j: (i, 0)),      # per-row LSE (accumulator out)
        ],
        out_shape=(jax.ShapeDtypeStruct((M, Vp), out_dtype),
                   jax.ShapeDtypeStruct((M, 1), jnp.float32)),
        scratch_shapes=[pltpu.VMEM((tm, 1), jnp.float32),
                        pltpu.VMEM((tm, 1), jnp.float32)],
        compiler_params=pltpu.CompilerParams(
            dimension_semantics=("parallel", "arbitrary"),
            vmem_limit_bytes=_VMEM_LIMIT),
    )(h, w, b.reshape(1, Vp))

    logp = pl.pallas_call(
        _sub_lse_kernel,
        grid=(M // tm, Vp // tv),
        in_specs=[
            pl.BlockSpec((tm, tv), lambda i, j: (i, j)),
            pl.BlockSpec((tm, 1), lambda i, j: (i, 0)),
        ],
        out_specs=pl.BlockSpec((tm, tv), lambda i, j: (i, j)),
        out_shape=jax.ShapeDtypeStruct((M, Vp), out_dtype),
        compiler_params=pltpu.CompilerParams(
            dimension_semantics=("parallel", "parallel"),
            vmem_limit_bytes=_VMEM_LIMIT),
    )(logits, lse)
    return logp[:, :V]


# --------------------------- model (glue in JAX) ---------------------------

def init_params(key, *, vocab_size, hidden, ff_hidden, max_seq, n_layers,
                n_heads, pad_idx, param_dtype=jnp.bfloat16):
    def normal(k, shape, scale=0.02):
        return (scale * jax.random.normal(k, shape, dtype=jnp.float32)).astype(param_dtype)

    ks = jax.random.split(key, 5 + n_layers)
    tok = normal(ks[0], (vocab_size, hidden)).at[pad_idx].set(0.0)   # padding_idx row
    pos = normal(ks[1], (max_seq + 1, hidden)).at[0].set(0.0)        # pos_pad=True: idx 0 = pad
    seg = normal(ks[2], (3, hidden)).at[0].set(0.0)                  # segment 0 = pad

    layers = []
    for li in range(n_layers):
        lk = jax.random.split(ks[3 + li], 4)
        layers.append(dict(
            # fused QKV projection weight: concat(Wq, Wk, Wv) along N -> (H, 3H)
            wqkv=normal(lk[0], (hidden, 3 * hidden)),
            bqkv=jnp.zeros((3 * hidden,), jnp.float32),
            wo=normal(lk[1], (hidden, hidden)), bo=jnp.zeros((hidden,), jnp.float32),
            ln1_g=jnp.ones((hidden,), jnp.float32), ln1_b=jnp.zeros((hidden,), jnp.float32),
            w1=normal(lk[2], (hidden, ff_hidden)), b1=jnp.zeros((ff_hidden,), jnp.float32),
            w2=normal(lk[3], (ff_hidden, hidden)), b2=jnp.zeros((hidden,), jnp.float32),
            ln2_g=jnp.ones((hidden,), jnp.float32), ln2_b=jnp.zeros((hidden,), jnp.float32),
        ))

    mlm_w = normal(ks[3 + n_layers], (hidden, vocab_size))
    nsp_w = 0.02 * jax.random.normal(ks[4 + n_layers], (hidden, 2), dtype=jnp.float32)
    return dict(tok=tok, pos=pos, seg=seg, layers=layers,
                mlm_w=mlm_w, mlm_b=jnp.zeros((vocab_size,), jnp.float32),
                nsp_w=nsp_w, nsp_b=jnp.zeros((2,), jnp.float32))


def encoder_layer(h2d, attn_mask, p, n_heads, B, S):
    H = h2d.shape[1]
    qkv = linear(h2d, p["wqkv"], p["bqkv"])                          # fused QKV matmul
    a = attention(qkv.reshape(B, S, 3 * H), attn_mask, n_heads)      # (B, S, H), packed reads
    h1 = linear_add_layernorm(a.reshape(B * S, H), p["wo"], p["bo"],
                              h2d, p["ln1_g"], p["ln1_b"])           # proj + add + LN fused
    ff = linear(h1, p["w1"], p["b1"], activation="gelu")
    return linear_add_layernorm(ff, p["w2"], p["b2"],
                                h1, p["ln2_g"], p["ln2_b"])          # FFN-down + add + LN fused


def bert_lm_forward(params, x_ids, x_segment=None, *, n_heads, pad_idx=0):
    B, S = x_ids.shape
    H = params["tok"].shape[1]
    is_pad = (x_ids == pad_idx)
    # get_padding_mask: attention keys at PAD positions masked with large negative (kept f32).
    attn_mask = jnp.where(is_pad, -1e9, 0.0).astype(jnp.float32)[:, None, :]   # (B, 1, S)

    # BERTInputBlock: token + learned (pad-aware) position + segment embedding.
    # TODO(synk): embedding gathers are left to XLA (no rectangular BlockSpec for them).
    tok = jnp.take(params["tok"], x_ids, axis=0)
    pos_ids = jnp.where(is_pad, 0, jnp.arange(1, S + 1, dtype=jnp.int32)[None, :])
    pos = jnp.take(params["pos"], pos_ids, axis=0)
    seg = jnp.zeros_like(tok) if x_segment is None else jnp.take(params["seg"], x_segment, axis=0)
    h2d = (tok + pos + seg).astype(params["tok"].dtype).reshape(B * S, H)  # dropout == identity

    for p in params["layers"]:
        h2d = encoder_layer(h2d, attn_mask, p, n_heads, B, S)

    # MaskedLanguageModelTask: Linear(H -> V) fused with log_softmax over vocab (bf16 out).
    V = params["mlm_w"].shape[1]
    mlm = mlm_head(h2d, params["mlm_w"], params["mlm_b"]).reshape(B, S, V)

    # NextSentencePredictionTask: tiny (B,H)@(H,2) + log_softmax on [CLS] — left to XLA
    # (output lane width 2 would be pure masked-store overhead in a Pallas kernel).
    cls = h2d.reshape(B, S, H)[:, 0, :].astype(jnp.float32)
    nsp = jax.nn.log_softmax(cls @ params["nsp_w"] + params["nsp_b"], axis=-1)
    return mlm, nsp


if __name__ == "__main__":
    VOCAB, HIDDEN, MAX_SEQ, N_LAYERS, N_HEADS, PAD = 64, 32, 16, 2, 4, 0
    B, S = 2, 8

    key = jax.random.PRNGKey(0)
    pk, xk = jax.random.split(key)
    params = init_params(pk, vocab_size=VOCAB, hidden=HIDDEN, ff_hidden=4 * HIDDEN,
                         max_seq=MAX_SEQ, n_layers=N_LAYERS, n_heads=N_HEADS, pad_idx=PAD)

    x_ids = jax.random.randint(xk, (B, S), 1, VOCAB, dtype=jnp.int32)
    x_ids = x_ids.at[:, -2:].set(PAD)            # trailing padding exercises the mask
    x_seg = jnp.where(x_ids == PAD, 0,
                      jnp.where(jnp.arange(S)[None, :] < S // 2, 1, 2)).astype(jnp.int32)

    fwd = jax.jit(functools.partial(bert_lm_forward, n_heads=N_HEADS, pad_idx=PAD))
    mlm, nsp = fwd(params, x_ids, x_seg)
    jax.block_until_ready((mlm, nsp))

    assert mlm.shape == (B, S, VOCAB) and nsp.shape == (B, 2)
    assert bool(jnp.all(jnp.isfinite(mlm.astype(jnp.float32))))
    assert bool(jnp.all(jnp.isfinite(nsp)))
    # valid log-softmax (mlm is bf16, so tolerance is bf16-scaled)
    assert bool(jnp.allclose(jnp.exp(mlm.astype(jnp.float32)).sum(-1), 1.0, atol=2e-2))
    assert bool(jnp.allclose(jnp.exp(nsp).sum(-1), 1.0, atol=1e-4))
    print("KERNEL_OK")
</pallas_src>

<mosaic_0001>
module attributes {stable_mosaic.version = 11 : i64} {
  func.func @_linear_kernel(%arg0: i32, %arg1: i32, %arg2: i32, %arg3: memref<16x32xbf16, #tpu.memory_space<vmem>>, %arg4: memref<32x96xbf16, #tpu.memory_space<vmem>>, %arg5: memref<1x96xf32, #tpu.memory_space<vmem>>, %arg6: memref<16x96xbf16, #tpu.memory_space<vmem>>, %arg7: memref<16x96xf32, #tpu.memory_space<vmem>>) attributes {dimension_semantics = [#tpu.dimension_semantics<parallel>, #tpu.dimension_semantics<parallel>, #tpu.dimension_semantics<arbitrary>], iteration_bounds = array<i64: 1, 1, 1>, scalar_prefetch = 0 : i64, scratch_operands = 1 : i64, tpu.core_type = #tpu.core_type<tc>, window_params = [{transform_indices = @transform_0, window_bounds = array<i64: 16, 32>}, {transform_indices = @transform_1, window_bounds = array<i64: 32, 96>}, {transform_indices = @transform_2, window_bounds = array<i64: 1, 96>}, {transform_indices = @transform_3, window_bounds = array<i64: 16, 96>}]} {
    %c0_i32 = arith.constant 0 : i32
    %0 = arith.cmpi eq, %arg2, %c0_i32 : i32
    %1 = arith.extui %0 : i1 to i32
    %c0_i32_0 = arith.constant 0 : i32
    %2 = arith.cmpi ne, %1, %c0_i32_0 : i32
    scf.if %2 {
      %cst_10 = arith.constant 0.000000e+00 : f32
      %12 = vector.broadcast %cst_10 : f32 to vector<16x96xf32>
      %c0_11 = arith.constant 0 : index
      %c0_12 = arith.constant 0 : index
      %13 = vector.load %arg7[%c0_11, %c0_12] : memref<16x96xf32, #tpu.memory_space<vmem>>, vector<16x96xf32>
      tpu.vector_store %arg7[%c0_11, %c0_12], %12 {strides = array<i32>} : memref<16x96xf32, #tpu.memory_space<vmem>>, vector<16x96xf32>,
    } else {
    }
    %c0 = arith.constant 0 : index
    %c0_1 = arith.constant 0 : index
    %3 = vector.load %arg7[%c0, %c0_1] : memref<16x96xf32, #tpu.memory_space<vmem>>, vector<16x96xf32>
    %c0_2 = arith.constant 0 : index
    %c0_3 = arith.constant 0 : index
    %4 = vector.load %arg3[%c0_2, %c0_3] : memref<16x32xbf16, #tpu.memory_space<vmem>>, vector<16x32xbf16>
    %c0_4 = arith.constant 0 : index
    %c0_5 = arith.constant 0 : index
    %5 = vector.load %arg4[%c0_4, %c0_5] : memref<32x96xbf16, #tpu.memory_space<vmem>>, vector<32x96xbf16>
    %cst = arith.constant dense<0.000000e+00> : vector<16x96xf32>
    %6 = tpu.matmul %4, %5, %cst {dimension_numbers = #tpu.dot_dimension_numbers<[1], [0], [0], [1], [0, 0, 1, 1], [], []>} : vector<16x32xbf16>, vector<32x96xbf16>, vector<16x96xf32> -> vector<16x96xf32>
    %7 = arith.addf %3, %6 : vector<16x96xf32>
    %c0_6 = arith.constant 0 : index
    %c0_7 = arith.constant 0 : index
    %8 = vector.load %arg7[%c0_6, %c0_7] : memref<16x96xf32, #tpu.memory_space<vmem>>, vector<16x96xf32>
    tpu.vector_store %arg7[%c0_6, %c0_7], %7 {strides = array<i32>} : memref<16x96xf32, #tpu.memory_space<vmem>>, vector<16x96xf32>,
    %c0_i32_8 = arith.constant 0 : i32
    %9 = arith.cmpi eq, %arg2, %c0_i32_8 : i32
    %10 = arith.extui %9 : i1 to i32
    %c0_i32_9 = arith.constant 0 : i32
    %11 = arith.cmpi ne, %10, %c0_i32_9 : i32
    scf.if %11 {
      %c0_10 = arith.constant 0 : index
      %c0_11 = arith.constant 0 : index
      %12 = vector.load %arg7[%c0_10, %c0_11] : memref<16x96xf32, #tpu.memory_space<vmem>>, vector<16x96xf32>
      %c0_12 = arith.constant 0 : index
      %c0_13 = arith.constant 0 : index
      %13 = vector.load %arg5[%c0_12, %c0_13] : memref<1x96xf32, #tpu.memory_space<vmem>>, vector<1x96xf32>
      %14 = vector.broadcast %13 : vector<1x96xf32> to vector<16x96xf32>
      %15 = arith.addf %12, %14 : vector<16x96xf32>
      %16 = arith.truncf %15 : vector<16x96xf32> to vector<16x96xbf16>
      %c0_14 = arith.constant 0 : index
      %c0_15 = arith.constant 0 : index
      %17 = vector.load %arg6[%c0_14, %c0_15] : memref<16x96xbf16, #tpu.memory_space<vmem>>, vector<16x96xbf16>
      tpu.vector_store %arg6[%c0_14, %c0_15], %16 {strides = array<i32>} : memref<16x96xbf16, #tpu.memory_space<vmem>>, vector<16x96xbf16>,
    } else {
    }
    return
  }
  func.func @transform_0(%arg0: i32, %arg1: i32, %arg2: i32) -> (i32, i32) {
    %c0_i32 = arith.constant 0 : i32
    return %arg0, %arg2 : i32, i32
  }
  func.func @transform_1(%arg0: i32, %arg1: i32, %arg2: i32) -> (i32, i32) {
    %c0_i32 = arith.constant 0 : i32
    return %arg2, %arg1 : i32, i32
  }
  func.func @transform_2(%arg0: i32, %arg1: i32, %arg2: i32) -> (i32, i32) {
    %c0_i32 = arith.constant 0 : i32
    %c0_i32_0 = arith.constant 0 : i32
    return %c0_i32, %arg1 : i32, i32
  }
  func.func @transform_3(%arg0: i32, %arg1: i32, %arg2: i32) -> (i32, i32) {
    %c0_i32 = arith.constant 0 : i32
    return %arg0, %arg1 : i32, i32
  }
}

module attributes {stable_mosaic.version = 11 : i64} {
  func.func @_linear_add_ln_kernel(%arg0: i32, %arg1: i32, %arg2: memref<16x32xbf16, #tpu.memory_space<vmem>>, %arg3: memref<32x32xbf16, #tpu.memory_space<vmem>>, %arg4: memref<1x32xf32, #tpu.memory_space<vmem>>, %arg5: memref<16x32xbf16, #tpu.memory_space<vmem>>, %arg6: memref<1x32xf32, #tpu.memory_space<vmem>>, %arg7: memref<1x32xf32, #tpu.memory_space<vmem>>, %arg8: memref<16x32xbf16, #tpu.memory_space<vmem>>, %arg9: memref<16x32xf32, #tpu.memory_space<vmem>>) attributes {dimension_semantics = [#tpu.dimension_semantics<parallel>, #tpu.dimension_semantics<arbitrary>], iteration_bounds = array<i64: 1, 1>, scalar_prefetch = 0 : i64, scratch_operands = 1 : i64, tpu.core_type = #tpu.core_type<tc>, window_params = [{transform_indices = @transform_0, window_bounds = array<i64: 16, 32>}, {transform_indices = @transform_1, window_bounds = array<i64: 32, 32>}, {pipeline_mode = #tpu.pipeline_mode<synchronous>, transform_indices = @transform_2, window_bounds = array<i64: 1, 32>}, {transform_indices = @transform_3, window_bounds = array<i64: 16, 32>}, {pipeline_mode = #tpu.pipeline_mode<synchronous>, transform_indices = @transform_4, window_bounds = array<i64: 1, 32>}, {pipeline_mode = #tpu.pipeline_mode<synchronous>, transform_indices = @transform_5, window_bounds = array<i64: 1, 32>}, {transform_indices = @transform_6, window_bounds = array<i64: 16, 32>}]} {
    %c0_i32 = arith.constant 0 : i32
    %0 = arith.cmpi eq, %arg1, %c0_i32 : i32
    %1 = arith.extui %0 : i1 to i32
    %c0_i32_0 = arith.constant 0 : i32
    %2 = arith.cmpi ne, %1, %c0_i32_0 : i32
    scf.if %2 {
      %cst_10 = arith.constant 0.000000e+00 : f32
      %12 = vector.broadcast %cst_10 : f32 to vector<16x32xf32>
      %c0_11 = arith.constant 0 : index
      %c0_12 = arith.constant 0 : index
      %13 = vector.load %arg9[%c0_11, %c0_12] : memref<16x32xf32, #tpu.memory_space<vmem>>, vector<16x32xf32>
      tpu.vector_store %arg9[%c0_11, %c0_12], %12 {strides = array<i32>} : memref<16x32xf32, #tpu.memory_space<vmem>>, vector<16x32xf32>,
    } else {
    }
    %c0 = arith.constant 0 : index
    %c0_1 = arith.constant 0 : index
    %3 = vector.load %arg9[%c0, %c0_1] : memref<16x32xf32, #tpu.memory_space<vmem>>, vector<16x32xf32>
    %c0_2 = arith.constant 0 : index
    %c0_3 = arith.constant 0 : index
    %4 = vector.load %arg2[%c0_2, %c0_3] : memref<16x32xbf16, #tpu.memory_space<vmem>>, vector<16x32xbf16>
    %c0_4 = arith.constant 0 : index
    %c0_5 = arith.constant 0 : index
    %5 = vector.load %arg3[%c0_4, %c0_5] : memref<32x32xbf16, #tpu.memory_space<vmem>>, vector<32x32xbf16>
    %cst = arith.constant dense<0.000000e+00> : vector<16x32xf32>
    %6 = tpu.matmul %4, %5, %cst {dimension_numbers = #tpu.dot_dimension_numbers<[1], [0], [0], [1], [0, 0, 1, 1], [], []>} : vector<16x32xbf16>, vector<32x32xbf16>, vector<16x32xf32> -> vector<16x32xf32>
    %7 = arith.addf %3, %6 : vector<16x32xf32>
    %c0_6 = arith.constant 0 : index
    %c0_7 = arith.constant 0 : index
    %8 = vector.load %arg9[%c0_6, %c0_7] : memref<16x32xf32, #tpu.memory_space<vmem>>, vector<16x32xf32>
    tpu.vector_store %arg9[%c0_6, %c0_7], %7 {strides = array<i32>} : memref<16x32xf32, #tpu.memory_space<vmem>>, vector<16x32xf32>,
    %c0_i32_8 = arith.constant 0 : i32
    %9 = arith.cmpi eq, %arg1, %c0_i32_8 : i32
    %10 = arith.extui %9 : i1 to i32
    %c0_i32_9 = arith.constant 0 : i32
    %11 = arith.cmpi ne, %10, %c0_i32_9 : i32
    scf.if %11 {
      %c0_10 = arith.constant 0 : index
      %c0_11 = arith.constant 0 : index
      %12 = vector.load %arg9[%c0_10, %c0_11] : memref<16x32xf32, #tpu.memory_space<vmem>>, vector<16x32xf32>
      %c0_12 = arith.constant 0 : index
      %c0_13 = arith.constant 0 : index
      %13 = vector.load %arg4[%c0_12, %c0_13] : memref<1x32xf32, #tpu.memory_space<vmem>>, vector<1x32xf32>
      %14 = vector.broadcast %13 : vector<1x32xf32> to vector<16x32xf32>
      %15 = arith.addf %12, %14 : vector<16x32xf32>
      %c0_14 = arith.constant 0 : index
      %c0_15 = arith.constant 0 : index
      %16 = vector.load %arg5[%c0_14, %c0_15] : memref<16x32xbf16, #tpu.memory_space<vmem>>, vector<16x32xbf16>
      %17 = arith.extf %16 : vector<16x32xbf16> to vector<16x32xf32>
      %18 = arith.addf %15, %17 : vector<16x32xf32>
      %cst_16 = arith.constant dense<0.000000e+00> : vector<16xf32>
      %19 = vector.multi_reduction <add>, %18, %cst_16 [1] : vector<16x32xf32> to vector<16xf32>
      %20 = vector.shape_cast %19 : vector<16xf32> to vector<16x1xf32>
      %cst_17 = arith.constant 3.200000e+01 : f32
      %21 = vector.broadcast %cst_17 : f32 to vector<16x1xf32>
      %22 = arith.divf %20, %21 : vector<16x1xf32>
      %23 = vector.broadcast %22 : vector<16x1xf32> to vector<16x32xf32>
      %24 = arith.subf %18, %23 : vector<16x32xf32>
      %25 = arith.mulf %24, %24 : vector<16x32xf32>
      %cst_18 = arith.constant dense<0.000000e+00> : vector<16xf32>
      %26 = vector.multi_reduction <add>, %25, %cst_18 [1] : vector<16x32xf32> to vector<16xf32>
      %27 = vector.shape_cast %26 : vector<16xf32> to vector<16x1xf32>
      %cst_19 = arith.constant 3.200000e+01 : f32
      %28 = vector.broadcast %cst_19 : f32 to vector<16x1xf32>
      %29 = arith.divf %27, %28 : vector<16x1xf32>
      %30 = vector.broadcast %22 : vector<16x1xf32> to vector<16x32xf32>
      %31 = arith.subf %18, %30 : vector<16x32xf32>
      %cst_20 = arith.constant 9.99999974E-6 : f32
      %32 = vector.broadcast %cst_20 : f32 to vector<16x1xf32>
      %33 = arith.addf %29, %32 : vector<16x1xf32>
      %34 = math.rsqrt %33 : vector<16x1xf32>
      %35 = vector.broadcast %34 : vector<16x1xf32> to vector<16x32xf32>
      %36 = arith.mulf %31, %35 : vector<16x32xf32>
      %c0_21 = arith.constant 0 : index
      %c0_22 = arith.constant 0 : index
      %37 = vector.load %arg6[%c0_21, %c0_22] : memref<1x32xf32, #tpu.memory_space<vmem>>, vector<1x32xf32>
      %38 = vector.broadcast %37 : vector<1x32xf32> to vector<16x32xf32>
      %39 = arith.mulf %36, %38 : vector<16x32xf32>
      %c0_23 = arith.constant 0 : index
      %c0_24 = arith.constant 0 : index
      %40 = vector.load %arg7[%c0_23, %c0_24] : memref<1x32xf32, #tpu.memory_space<vmem>>, vector<1x32xf32>
      %41 = vector.broadcast %40 : vector<1x32xf32> to vector<16x32xf32>
      %42 = arith.addf %39, %41 : vector<16x32xf32>
      %43 = arith.truncf %42 : vector<16x32xf32> to vector<16x32xbf16>
      %c0_25 = arith.constant 0 : index
      %c0_26 = arith.constant 0 : index
      %44 = vector.load %arg8[%c0_25, %c0_26] : memref<16x32xbf16, #tpu.memory_space<vmem>>, vector<16x32xbf16>
      tpu.vector_store %arg8[%c0_25, %c0_26], %43 {strides = array<i32>} : memref<16x32xbf16, #tpu.memory_space<vmem>>, vector<16x32xbf16>,
    } else {
    }
    return
  }
  func.func @transform_0(%arg0: i32, %arg1: i32) -> (i32, i32) {
    %c0_i32 = arith.constant 0 : i32
    return %arg0, %arg1 : i32, i32
  }
  func.func @transform_1(%arg0: i32, %arg1: i32) -> (i32, i32) {
    %c0_i32 = arith.constant 0 : i32
    %c0_i32_0 = arith.constant 0 : i32
    return %arg1, %c0_i32 : i32, i32
  }
  func.func @transform_2(%arg0: i32, %arg1: i32) -> (i32, i32) {
    %c0_i32 = arith.constant 0 : i32
    %c0_i32_0 = arith.constant 0 : i32
    %c0_i32_1 = arith.constant 0 : i32
    return %c0_i32, %c0_i32_0 : i32, i32
  }
  func.func @transform_3(%arg0: i32, %arg1: i32) -> (i32, i32) {
    %c0_i32 = arith.constant 0 : i32
    %c0_i32_0 = arith.constant 0 : i32
    return %arg0, %c0_i32 : i32, i32
  }
  func.func @transform_4(%arg0: i32, %arg1: i32) -> (i32, i32) {
    %c0_i32 = arith.constant 0 : i32
    %c0_i32_0 = arith.constant 0 : i32
    %c0_i32_1 = arith.constant 0 : i32
    return %c0_i32, %c0_i32_0 : i32, i32
  }
  func.func @transform_5(%arg0: i32, %arg1: i32) -> (i32, i32) {
    %c0_i32 = arith.constant 0 : i32
    %c0_i32_0 = arith.constant 0 : i32
    %c0_i32_1 = arith.constant 0 : i32
    return %c0_i32, %c0_i32_0 : i32, i32
  }
  func.func @transform_6(%arg0: i32, %arg1: i32) -> (i32, i32) {
    %c0_i32 = arith.constant 0 : i32
    %c0_i32_0 = arith.constant 0 : i32
    return %arg0, %c0_i32 : i32, i32
  }
}

module attributes {stable_mosaic.version = 11 : i64} {
  func.func @_attention_kernel(%arg0: i32, %arg1: i32, %arg2: memref<1x8x96xbf16, #tpu.memory_space<vmem>>, %arg3: memref<1x8x96xbf16, #tpu.memory_space<vmem>>, %arg4: memref<1x1x8xf32, #tpu.memory_space<vmem>>, %arg5: memref<1x8x32xbf16, #tpu.memory_space<vmem>>) attributes {dimension_semantics = [#tpu.dimension_semantics<parallel>, #tpu.dimension_semantics<parallel>], iteration_bounds = array<i64: 2, 1>, scalar_prefetch = 0 : i64, scratch_operands = 0 : i64, tpu.core_type = #tpu.core_type<tc>, window_params = [{transform_indices = @transform_0, window_bounds = array<i64: 1, 8, 96>}, {transform_indices = @transform_1, window_bounds = array<i64: 1, 8, 96>}, {transform_indices = @transform_2, window_bounds = array<i64: 1, 1, 8>}, {transform_indices = @transform_3, window_bounds = array<i64: 1, 8, 32>}]} {
    %c0 = arith.constant 0 : index
    %c0_0 = arith.constant 0 : index
    %c0_1 = arith.constant 0 : index
    %0 = vector.load %arg4[%c0, %c0_0, %c0_1] : memref<1x1x8xf32, #tpu.memory_space<vmem>>, vector<1x1x8xf32>
    %1 = vector.shape_cast %0 : vector<1x1x8xf32> to vector<1x8xf32>
    %c0_2 = arith.constant 0 : index
    %c0_3 = arith.constant 0 : index
    %c0_4 = arith.constant 0 : index
    %2 = vector.load %arg2[%c0_2, %c0_3, %c0_4] : memref<1x8x96xbf16, #tpu.memory_space<vmem>>, vector<1x8x8xbf16>
    %3 = vector.shape_cast %2 : vector<1x8x8xbf16> to vector<8x8xbf16>
    %cst = arith.constant 3.535160e-01 : bf16
    %4 = vector.broadcast %cst : bf16 to vector<8x8xbf16>
    %5 = arith.mulf %3, %4 : vector<8x8xbf16>
    %c0_5 = arith.constant 0 : index
    %c0_6 = arith.constant 0 : index
    %c32 = arith.constant 32 : index
    %6 = vector.load %arg3[%c0_5, %c0_6, %c32] : memref<1x8x96xbf16, #tpu.memory_space<vmem>>, vector<1x8x8xbf16>
    %7 = vector.shape_cast %6 : vector<1x8x8xbf16> to vector<8x8xbf16>
    %c0_7 = arith.constant 0 : index
    %c0_8 = arith.constant 0 : index
    %c64 = arith.constant 64 : index
    %8 = vector.load %arg3[%c0_7, %c0_8, %c64] : memref<1x8x96xbf16, #tpu.memory_space<vmem>>, vector<1x8x8xbf16>
    %9 = vector.shape_cast %8 : vector<1x8x8xbf16> to vector<8x8xbf16>
    %cst_9 = arith.constant dense<0.000000e+00> : vector<8x8xf32>
    %10 = tpu.matmul %5, %7, %cst_9 {dimension_numbers = #tpu.dot_dimension_numbers<[1], [1], [0], [0], [0, 0, 1, 0], [], []>} : vector<8x8xbf16>, vector<8x8xbf16>, vector<8x8xf32> -> vector<8x8xf32>
    %11 = vector.broadcast %1 : vector<1x8xf32> to vector<8x8xf32>
    %12 = arith.addf %10, %11 : vector<8x8xf32>
    %cst_10 = arith.constant dense<0xFF800000> : vector<8xf32>
    %13 = vector.multi_reduction <maximumf>, %12, %cst_10 [1] : vector<8x8xf32> to vector<8xf32>
    %14 = vector.shape_cast %13 : vector<8xf32> to vector<8x1xf32>
    %15 = vector.broadcast %14 : vector<8x1xf32> to vector<8x8xf32>
    %16 = arith.subf %12, %15 : vector<8x8xf32>
    %17 = math.exp %16 : vector<8x8xf32>
    %cst_11 = arith.constant dense<0.000000e+00> : vector<8xf32>
    %18 = vector.multi_reduction <add>, %17, %cst_11 [1] : vector<8x8xf32> to vector<8xf32>
    %19 = vector.shape_cast %18 : vector<8xf32> to vector<8x1xf32>
    %20 = tpu.reciprocal %19 {approx = true} : vector<8x1xf32> -> vector<8x1xf32>
    %21 = vector.broadcast %20 : vector<8x1xf32> to vector<8x8xf32>
    %22 = arith.mulf %17, %21 : vector<8x8xf32>
    %23 = arith.truncf %22 : vector<8x8xf32> to vector<8x8xbf16>
    %cst_12 = arith.constant dense<0.000000e+00> : vector<8x8xf32>
    %24 = tpu.matmul %23, %9, %cst_12 {dimension_numbers = #tpu.dot_dimension_numbers<[1], [0], [0], [1], [0, 0, 1, 1], [], []>} : vector<8x8xbf16>, vector<8x8xbf16>, vector<8x8xf32> -> vector<8x8xf32>
    %c0_13 = arith.constant 0 : index
    %c0_14 = arith.constant 0 : index
    %c8 = arith.constant 8 : index
    %25 = vector.load %arg2[%c0_13, %c0_14, %c8] : memref<1x8x96xbf16, #tpu.memory_space<vmem>>, vector<1x8x8xbf16>
    %26 = vector.shape_cast %25 : vector<1x8x8xbf16> to vector<8x8xbf16>
    %cst_15 = arith.constant 3.535160e-01 : bf16
    %27 = vector.broadcast %cst_15 : bf16 to vector<8x8xbf16>
    %28 = arith.mulf %26, %27 : vector<8x8xbf16>
    %c0_16 = arith.constant 0 : index
    %c0_17 = arith.constant 0 : index
    %c40 = arith.constant 40 : index
    %29 = vector.load %arg3[%c0_16, %c0_17, %c40] : memref<1x8x96xbf16, #tpu.memory_space<vmem>>, vector<1x8x8xbf16>
    %30 = vector.shape_cast %29 : vector<1x8x8xbf16> to vector<8x8xbf16>
    %c0_18 = arith.constant 0 : index
    %c0_19 = arith.constant 0 : index
    %c72 = arith.constant 72 : index
    %31 = vector.load %arg3[%c0_18, %c0_19, %c72] : memref<1x8x96xbf16, #tpu.memory_space<vmem>>, vector<1x8x8xbf16>
    %32 = vector.shape_cast %31 : vector<1x8x8xbf16> to vector<8x8xbf16>
    %cst_20 = arith.constant dense<0.000000e+00> : vector<8x8xf32>
    %33 = tpu.matmul %28, %30, %cst_20 {dimension_numbers = #tpu.dot_dimension_numbers<[1], [1], [0], [0], [0, 0, 1, 0], [], []>} : vector<8x8xbf16>, vector<8x8xbf16>, vector<8x8xf32> -> vector<8x8xf32>
    %34 = vector.broadcast %1 : vector<1x8xf32> to vector<8x8xf32>
    %35 = arith.addf %33, %34 : vector<8x8xf32>
    %cst_21 = arith.constant dense<0xFF800000> : vector<8xf32>
    %36 = vector.multi_reduction <maximumf>, %35, %cst_21 [1] : vector<8x8xf32> to vector<8xf32>
    %37 = vector.shape_cast %36 : vector<8xf32> to vector<8x1xf32>
    %38 = vector.broadcast %37 : vector<8x1xf32> to vector<8x8xf32>
    %39 = arith.subf %35, %38 : vector<8x8xf32>
    %40 = math.exp %39 : vector<8x8xf32>
    %cst_22 = arith.constant dense<0.000000e+00> : vector<8xf32>
    %41 = vector.multi_reduction <add>, %40, %cst_22 [1] : vector<8x8xf32> to vector<8xf32>
    %42 = vector.shape_cast %41 : vector<8xf32> to vector<8x1xf32>
    %43 = tpu.reciprocal %42 {approx = true} : vector<8x1xf32> -> vector<8x1xf32>
    %44 = vector.broadcast %43 : vector<8x1xf32> to vector<8x8xf32>
    %45 = arith.mulf %40, %44 : vector<8x8xf32>
    %46 = arith.truncf %45 : vector<8x8xf32> to vector<8x8xbf16>
    %cst_23 = arith.constant dense<0.000000e+00> : vector<8x8xf32>
    %47 = tpu.matmul %46, %32, %cst_23 {dimension_numbers = #tpu.dot_dimension_numbers<[1], [0], [0], [1], [0, 0, 1, 1], [], []>} : vector<8x8xbf16>, vector<8x8xbf16>, vector<8x8xf32> -> vector<8x8xf32>
    %c0_24 = arith.constant 0 : index
    %c0_25 = arith.constant 0 : index
    %c16 = arith.constant 16 : index
    %48 = vector.load %arg2[%c0_24, %c0_25, %c16] : memref<1x8x96xbf16, #tpu.memory_space<vmem>>, vector<1x8x8xbf16>
    %49 = vector.shape_cast %48 : vector<1x8x8xbf16> to vector<8x8xbf16>
    %cst_26 = arith.constant 3.535160e-01 : bf16
    %50 = vector.broadcast %cst_26 : bf16 to vector<8x8xbf16>
    %51 = arith.mulf %49, %50 : vector<8x8xbf16>
    %c0_27 = arith.constant 0 : index
    %c0_28 = arith.constant 0 : index
    %c48 = arith.constant 48 : index
    %52 = vector.load %arg3[%c0_27, %c0_28, %c48] : memref<1x8x96xbf16, #tpu.memory_space<vmem>>, vector<1x8x8xbf16>
    %53 = vector.shape_cast %52 : vector<1x8x8xbf16> to vector<8x8xbf16>
    %c0_29 = arith.constant 0 : index
    %c0_30 = arith.constant 0 : index
    %c80 = arith.constant 80 : index
    %54 = vector.load %arg3[%c0_29, %c0_30, %c80] : memref<1x8x96xbf16, #tpu.memory_space<vmem>>, vector<1x8x8xbf16>
    %55 = vector.shape_cast %54 : vector<1x8x8xbf16> to vector<8x8xbf16>
    %cst_31 = arith.constant dense<0.000000e+00> : vector<8x8xf32>
    %56 = tpu.matmul %51, %53, %cst_31 {dimension_numbers = #tpu.dot_dimension_numbers<[1], [1], [0], [0], [0, 0, 1, 0], [], []>} : vector<8x8xbf16>, vector<8x8xbf16>, vector<8x8xf32> -> vector<8x8xf32>
    %57 = vector.broadcast %1 : vector<1x8xf32> to vector<8x8xf32>
    %58 = arith.addf %56, %57 : vector<8x8xf32>
    %cst_32 = arith.constant dense<0xFF800000> : vector<8xf32>
    %59 = vector.multi_reduction <maximumf>, %58, %cst_32 [1] : vector<8x8xf32> to vector<8xf32>
    %60 = vector.shape_cast %59 : vector<8xf32> to vector<8x1xf32>
    %61 = vector.broadcast %60 : vector<8x1xf32> to vector<8x8xf32>
    %62 = arith.subf %58, %61 : vector<8x8xf32>
    %63 = math.exp %62 : vector<8x8xf32>
    %cst_33 = arith.constant dense<0.000000e+00> : vector<8xf32>
    %64 = vector.multi_reduction <add>, %63, %cst_33 [1] : vector<8x8xf32> to vector<8xf32>
    %65 = vector.shape_cast %64 : vector<8xf32> to vector<8x1xf32>
    %66 = tpu.reciprocal %65 {approx = true} : vector<8x1xf32> -> vector<8x1xf32>
    %67 = vector.broadcast %66 : vector<8x1xf32> to vector<8x8xf32>
    %68 = arith.mulf %63, %67 : vector<8x8xf32>
    %69 = arith.truncf %68 : vector<8x8xf32> to vector<8x8xbf16>
    %cst_34 = arith.constant dense<0.000000e+00> : vector<8x8xf32>
    %70 = tpu.matmul %69, %55, %cst_34 {dimension_numbers = #tpu.dot_dimension_numbers<[1], [0], [0], [1], [0, 0, 1, 1], [], []>} : vector<8x8xbf16>, vector<8x8xbf16>, vector<8x8xf32> -> vector<8x8xf32>
    %c0_35 = arith.constant 0 : index
    %c0_36 = arith.constant 0 : index
    %c24 = arith.constant 24 : index
    %71 = vector.load %arg2[%c0_35, %c0_36, %c24] : memref<1x8x96xbf16, #tpu.memory_space<vmem>>, vector<1x8x8xbf16>
    %72 = vector.shape_cast %71 : vector<1x8x8xbf16> to vector<8x8xbf16>
    %cst_37 = arith.constant 3.535160e-01 : bf16
    %73 = vector.broadcast %cst_37 : bf16 to vector<8x8xbf16>
    %74 = arith.mulf %72, %73 : vector<8x8xbf16>
    %c0_38 = arith.constant 0 : index
    %c0_39 = arith.constant 0 : index
    %c56 = arith.constant 56 : index
    %75 = vector.load %arg3[%c0_38, %c0_39, %c56] : memref<1x8x96xbf16, #tpu.memory_space<vmem>>, vector<1x8x8xbf16>
    %76 = vector.shape_cast %75 : vector<1x8x8xbf16> to vector<8x8xbf16>
    %c0_40 = arith.constant 0 : index
    %c0_41 = arith.constant 0 : index
    %c88 = arith.constant 88 : index
    %77 = vector.load %arg3[%c0_40, %c0_41, %c88] : memref<1x8x96xbf16, #tpu.memory_space<vmem>>, vector<1x8x8xbf16>
    %78 = vector.shape_cast %77 : vector<1x8x8xbf16> to vector<8x8xbf16>
    %cst_42 = arith.constant dense<0.000000e+00> : vector<8x8xf32>
    %79 = tpu.matmul %74, %76, %cst_42 {dimension_numbers = #tpu.dot_dimension_numbers<[1], [1], [0], [0], [0, 0, 1, 0], [], []>} : vector<8x8xbf16>, vector<8x8xbf16>, vector<8x8xf32> -> vector<8x8xf32>
    %80 = vector.broadcast %1 : vector<1x8xf32> to vector<8x8xf32>
    %81 = arith.addf %79, %80 : vector<8x8xf32>
    %cst_43 = arith.constant dense<0xFF800000> : vector<8xf32>
    %82 = vector.multi_reduction <maximumf>, %81, %cst_43 [1] : vector<8x8xf32> to vector<8xf32>
    %83 = vector.shape_cast %82 : vector<8xf32> to vector<8x1xf32>
    %84 = vector.broadcast %83 : vector<8x1xf32> to vector<8x8xf32>
    %85 = arith.subf %81, %84 : vector<8x8xf32>
    %86 = math.exp %85 : vector<8x8xf32>
    %cst_44 = arith.constant dense<0.000000e+00> : vector<8xf32>
    %87 = vector.multi_reduction <add>, %86, %cst_44 [1] : vector<8x8xf32> to vector<8xf32>
    %88 = vector.shape_cast %87 : vector<8xf32> to vector<8x1xf32>
    %89 = tpu.reciprocal %88 {approx = true} : vector<8x1xf32> -> vector<8x1xf32>
    %90 = vector.broadcast %89 : vector<8x1xf32> to vector<8x8xf32>
    %91 = arith.mulf %86, %90 : vector<8x8xf32>
    %92 = arith.truncf %91 : vector<8x8xf32> to vector<8x8xbf16>
    %cst_45 = arith.constant dense<0.000000e+00> : vector<8x8xf32>
    %93 = tpu.matmul %92, %78, %cst_45 {dimension_numbers = #tpu.dot_dimension_numbers<[1], [0], [0], [1], [0, 0, 1, 1], [], []>} : vector<8x8xbf16>, vector<8x8xbf16>, vector<8x8xf32> -> vector<8x8xf32>
    %94 = tpu.concatenate %24, %47, %70, %93 in 1 : vector<8x8xf32>, vector<8x8xf32>, vector<8x8xf32>, vector<8x8xf32> -> vector<8x32xf32>
    %95 = arith.truncf %94 : vector<8x32xf32> to vector<8x32xbf16>
    %c0_46 = arith.constant 0 : index
    %c0_47 = arith.constant 0 : index
    %c0_48 = arith.constant 0 : index
    %96 = vector.load %arg5[%c0_46, %c0_47, %c0_48] : memref<1x8x32xbf16, #tpu.memory_space<vmem>>, vector<1x8x32xbf16>
    %97 = vector.shape_cast %96 : vector<1x8x32xbf16> to vector<8x32xbf16>
    %98 = vector.shape_cast %95 : vector<8x32xbf16> to vector<1x8x32xbf16>
    tpu.vector_store %arg5[%c0_46, %c0_47, %c0_48], %98 {strides = array<i32>} : memref<1x8x32xbf16, #tpu.memory_space<vmem>>, vector<1x8x32xbf16>,
    return
  }
  func.func @transform_0(%arg0: i32, %arg1: i32) -> (i32, i32, i32) {
    %c0_i32 = arith.constant 0 : i32
    %c0_i32_0 = arith.constant 0 : i32
    return %arg0, %arg1, %c0_i32 : i32, i32, i32
  }
  func.func @transform_1(%arg0: i32, %arg1: i32) -> (i32, i32, i32) {
    %c0_i32 = arith.constant 0 : i32
    %c0_i32_0 = arith.constant 0 : i32
    %c0_i32_1 = arith.constant 0 : i32
    return %arg0, %c0_i32, %c0_i32_0 : i32, i32, i32
  }
  func.func @transform_2(%arg0: i32, %arg1: i32) -> (i32, i32, i32) {
    %c0_i32 = arith.constant 0 : i32
    %c0_i32_0 = arith.constant 0 : i32
    %c0_i32_1 = arith.constant 0 : i32
    return %arg0, %c0_i32, %c0_i32_0 : i32, i32, i32
  }
  func.func @transform_3(%arg0: i32, %arg1: i32) -> (i32, i32, i32) {
    %c0_i32 = arith.constant 0 : i32
    %c0_i32_0 = arith.constant 0 : i32
    return %arg0, %arg1, %c0_i32 : i32, i32, i32
  }
}

module attributes {stable_mosaic.version = 11 : i64} {
  func.func @_linear_kernel(%arg0: i32, %arg1: i32, %arg2: i32, %arg3: memref<16x32xbf16, #tpu.memory_space<vmem>>, %arg4: memref<32x128xbf16, #tpu.memory_space<vmem>>, %arg5: memref<1x128xf32, #tpu.memory_space<vmem>>, %arg6: memref<16x128xbf16, #tpu.memory_space<vmem>>, %arg7: memref<16x128xf32, #tpu.memory_space<vmem>>) attributes {dimension_semantics = [#tpu.dimension_semantics<parallel>, #tpu.dimension_semantics<parallel>, #tpu.dimension_semantics<arbitrary>], iteration_bounds = array<i64: 1, 1, 1>, scalar_prefetch = 0 : i64, scratch_operands = 1 : i64, tpu.core_type = #tpu.core_type<tc>, window_params = [{transform_indices = @transform_0, window_bounds = array<i64: 16, 32>}, {transform_indices = @transform_1, window_bounds = array<i64: 32, 128>}, {transform_indices = @transform_2, window_bounds = array<i64: 1, 128>}, {transform_indices = @transform_3, window_bounds = array<i64: 16, 128>}]} {
    %c0_i32 = arith.constant 0 : i32
    %0 = arith.cmpi eq, %arg2, %c0_i32 : i32
    %1 = arith.extui %0 : i1 to i32
    %c0_i32_0 = arith.constant 0 : i32
    %2 = arith.cmpi ne, %1, %c0_i32_0 : i32
    scf.if %2 {
      %cst_10 = arith.constant 0.000000e+00 : f32
      %12 = vector.broadcast %cst_10 : f32 to vector<16x128xf32>
      %c0_11 = arith.constant 0 : index
      %c0_12 = arith.constant 0 : index
      %13 = vector.load %arg7[%c0_11, %c0_12] : memref<16x128xf32, #tpu.memory_space<vmem>>, vector<16x128xf32>
      tpu.vector_store %arg7[%c0_11, %c0_12], %12 {strides = array<i32>} : memref<16x128xf32, #tpu.memory_space<vmem>>, vector<16x128xf32>,
    } else {
    }
    %c0 = arith.constant 0 : index
    %c0_1 = arith.constant 0 : index
    %3 = vector.load %arg7[%c0, %c0_1] : memref<16x128xf32, #tpu.memory_space<vmem>>, vector<16x128xf32>
    %c0_2 = arith.constant 0 : index
    %c0_3 = arith.constant 0 : index
    %4 = vector.load %arg3[%c0_2, %c0_3] : memref<16x32xbf16, #tpu.memory_space<vmem>>, vector<16x32xbf16>
    %c0_4 = arith.constant 0 : index
    %c0_5 = arith.constant 0 : index
    %5 = vector.load %arg4[%c0_4, %c0_5] : memref<32x128xbf16, #tpu.memory_space<vmem>>, vector<32x128xbf16>
    %cst = arith.constant dense<0.000000e+00> : vector<16x128xf32>
    %6 = tpu.matmul %4, %5, %cst {dimension_numbers = #tpu.dot_dimension_numbers<[1], [0], [0], [1], [0, 0, 1, 1], [], []>} : vector<16x32xbf16>, vector<32x128xbf16>, vector<16x128xf32> -> vector<16x128xf32>
    %7 = arith.addf %3, %6 : vector<16x128xf32>
    %c0_6 = arith.constant 0 : index
    %c0_7 = arith.constant 0 : index
    %8 = vector.load %arg7[%c0_6, %c0_7] : memref<16x128xf32, #tpu.memory_space<vmem>>, vector<16x128xf32>
    tpu.vector_store %arg7[%c0_6, %c0_7], %7 {strides = array<i32>} : memref<16x128xf32, #tpu.memory_space<vmem>>, vector<16x128xf32>,
    %c0_i32_8 = arith.constant 0 : i32
    %9 = arith.cmpi eq, %arg2, %c0_i32_8 : i32
    %10 = arith.extui %9 : i1 to i32
    %c0_i32_9 = arith.constant 0 : i32
    %11 = arith.cmpi ne, %10, %c0_i32_9 : i32
    scf.if %11 {
      %c0_10 = arith.constant 0 : index
      %c0_11 = arith.constant 0 : index
      %12 = vector.load %arg7[%c0_10, %c0_11] : memref<16x128xf32, #tpu.memory_space<vmem>>, vector<16x128xf32>
      %c0_12 = arith.constant 0 : index
      %c0_13 = arith.constant 0 : index
      %13 = vector.load %arg5[%c0_12, %c0_13] : memref<1x128xf32, #tpu.memory_space<vmem>>, vector<1x128xf32>
      %14 = vector.broadcast %13 : vector<1x128xf32> to vector<16x128xf32>
      %15 = arith.addf %12, %14 : vector<16x128xf32>
      %16 = arith.mulf %15, %15 : vector<16x128xf32>
      %17 = arith.mulf %15, %16 : vector<16x128xf32>
      %cst_14 = arith.constant 4.471500e-02 : f32
      %18 = vector.broadcast %cst_14 : f32 to vector<16x128xf32>
      %19 = arith.mulf %18, %17 : vector<16x128xf32>
      %20 = arith.addf %15, %19 : vector<16x128xf32>
      %cst_15 = arith.constant 0.797884583 : f32
      %21 = vector.broadcast %cst_15 : f32 to vector<16x128xf32>
      %22 = arith.mulf %21, %20 : vector<16x128xf32>
      %23 = math.tanh %22 : vector<16x128xf32>
      %cst_16 = arith.constant 1.000000e+00 : f32
      %24 = vector.broadcast %cst_16 : f32 to vector<16x128xf32>
      %25 = arith.addf %24, %23 : vector<16x128xf32>
      %cst_17 = arith.constant 5.000000e-01 : f32
      %26 = vector.broadcast %cst_17 : f32 to vector<16x128xf32>
      %27 = arith.mulf %26, %25 : vector<16x128xf32>
      %28 = arith.mulf %15, %27 : vector<16x128xf32>
      %29 = arith.truncf %28 : vector<16x128xf32> to vector<16x128xbf16>
      %c0_18 = arith.constant 0 : index
      %c0_19 = arith.constant 0 : index
      %30 = vector.load %arg6[%c0_18, %c0_19] : memref<16x128xbf16, #tpu.memory_space<vmem>>, vector<16x128xbf16>
      tpu.vector_store %arg6[%c0_18, %c0_19], %29 {strides = array<i32>} : memref<16x128xbf16, #tpu.memory_space<vmem>>, vector<16x128xbf16>,
    } else {
    }
    return
  }
  func.func @transform_0(%arg0: i32, %arg1: i32, %arg2: i32) -> (i32, i32) {
    %c0_i32 = arith.constant 0 : i32
    return %arg0, %arg2 : i32, i32
  }
  func.func @transform_1(%arg0: i32, %arg1: i32, %arg2: i32) -> (i32, i32) {
    %c0_i32 = arith.constant 0 : i32
    return %arg2, %arg1 : i32, i32
  }
  func.func @transform_2(%arg0: i32, %arg1: i32, %arg2: i32) -> (i32, i32) {
    %c0_i32 = arith.constant 0 : i32
    %c0_i32_0 = arith.constant 0 : i32
    return %c0_i32, %arg1 : i32, i32
  }
  func.func @transform_3(%arg0: i32, %arg1: i32, %arg2: i32) -> (i32, i32) {
    %c0_i32 = arith.constant 0 : i32
    return %arg0, %arg1 : i32, i32
  }
}

module attributes {stable_mosaic.version = 11 : i64} {
  func.func @_linear_add_ln_kernel(%arg0: i32, %arg1: i32, %arg2: memref<16x128xbf16, #tpu.memory_space<vmem>>, %arg3: memref<128x32xbf16, #tpu.memory_space<vmem>>, %arg4: memref<1x32xf32, #tpu.memory_space<vmem>>, %arg5: memref<16x32xbf16, #tpu.memory_space<vmem>>, %arg6: memref<1x32xf32, #tpu.memory_space<vmem>>, %arg7: memref<1x32xf32, #tpu.memory_space<vmem>>, %arg8: memref<16x32xbf16, #tpu.memory_space<vmem>>, %arg9: memref<16x32xf32, #tpu.memory_space<vmem>>) attributes {dimension_semantics = [#tpu.dimension_semantics<parallel>, #tpu.dimension_semantics<arbitrary>], iteration_bounds = array<i64: 1, 1>, scalar_prefetch = 0 : i64, scratch_operands = 1 : i64, tpu.core_type = #tpu.core_type<tc>, window_params = [{transform_indices = @transform_0, window_bounds = array<i64: 16, 128>}, {transform_indices = @transform_1, window_bounds = array<i64: 128, 32>}, {pipeline_mode = #tpu.pipeline_mode<synchronous>, transform_indices = @transform_2, window_bounds = array<i64: 1, 32>}, {transform_indices = @transform_3, window_bounds = array<i64: 16, 32>}, {pipeline_mode = #tpu.pipeline_mode<synchronous>, transform_indices = @transform_4, window_bounds = array<i64: 1, 32>}, {pipeline_mode = #tpu.pipeline_mode<synchronous>, transform_indices = @transform_5, window_bounds = array<i64: 1, 32>}, {transform_indices = @transform_6, window_bounds = array<i64: 16, 32>}]} {
    %c0_i32 = arith.constant 0 : i32
    %0 = arith.cmpi eq, %arg1, %c0_i32 : i32
    %1 = arith.extui %0 : i1 to i32
    %c0_i32_0 = arith.constant 0 : i32
    %2 = arith.cmpi ne, %1, %c0_i32_0 : i32
    scf.if %2 {
      %cst_10 = arith.constant 0.000000e+00 : f32
      %12 = vector.broadcast %cst_10 : f32 to vector<16x32xf32>
      %c0_11 = arith.constant 0 : index
      %c0_12 = arith.constant 0 : index
      %13 = vector.load %arg9[%c0_11, %c0_12] : memref<16x32xf32, #tpu.memory_space<vmem>>, vector<16x32xf32>
      tpu.vector_store %arg9[%c0_11, %c0_12], %12 {strides = array<i32>} : memref<16x32xf32, #tpu.memory_space<vmem>>, vector<16x32xf32>,
    } else {
    }
    %c0 = arith.constant 0 : index
    %c0_1 = arith.constant 0 : index
    %3 = vector.load %arg9[%c0, %c0_1] : memref<16x32xf32, #tpu.memory_space<vmem>>, vector<16x32xf32>
    %c0_2 = arith.constant 0 : index
    %c0_3 = arith.constant 0 : index
    %4 = vector.load %arg2[%c0_2, %c0_3] : memref<16x128xbf16, #tpu.memory_space<vmem>>, vector<16x128xbf16>
    %c0_4 = arith.constant 0 : index
    %c0_5 = arith.constant 0 : index
    %5 = vector.load %arg3[%c0_4, %c0_5] : memref<128x32xbf16, #tpu.memory_space<vmem>>, vector<128x32xbf16>
    %cst = arith.constant dense<0.000000e+00> : vector<16x32xf32>
    %6 = tpu.matmul %4, %5, %cst {dimension_numbers = #tpu.dot_dimension_numbers<[1], [0], [0], [1], [0, 0, 1, 1], [], []>} : vector<16x128xbf16>, vector<128x32xbf16>, vector<16x32xf32> -> vector<16x32xf32>
    %7 = arith.addf %3, %6 : vector<16x32xf32>
    %c0_6 = arith.constant 0 : index
    %c0_7 = arith.constant 0 : index
    %8 = vector.load %arg9[%c0_6, %c0_7] : memref<16x32xf32, #tpu.memory_space<vmem>>, vector<16x32xf32>
    tpu.vector_store %arg9[%c0_6, %c0_7], %7 {strides = array<i32>} : memref<16x32xf32, #tpu.memory_space<vmem>>, vector<16x32xf32>,
    %c0_i32_8 = arith.constant 0 : i32
    %9 = arith.cmpi eq, %arg1, %c0_i32_8 : i32
    %10 = arith.extui %9 : i1 to i32
    %c0_i32_9 = arith.constant 0 : i32
    %11 = arith.cmpi ne, %10, %c0_i32_9 : i32
    scf.if %11 {
      %c0_10 = arith.constant 0 : index
      %c0_11 = arith.constant 0 : index
      %12 = vector.load %arg9[%c0_10, %c0_11] : memref<16x32xf32, #tpu.memory_space<vmem>>, vector<16x32xf32>
      %c0_12 = arith.constant 0 : index
      %c0_13 = arith.constant 0 : index
      %13 = vector.load %arg4[%c0_12, %c0_13] : memref<1x32xf32, #tpu.memory_space<vmem>>, vector<1x32xf32>
      %14 = vector.broadcast %13 : vector<1x32xf32> to vector<16x32xf32>
      %15 = arith.addf %12, %14 : vector<16x32xf32>
      %c0_14 = arith.constant 0 : index
      %c0_15 = arith.constant 0 : index
      %16 = vector.load %arg5[%c0_14, %c0_15] : memref<16x32xbf16, #tpu.memory_space<vmem>>, vector<16x32xbf16>
      %17 = arith.extf %16 : vector<16x32xbf16> to vector<16x32xf32>
      %18 = arith.addf %15, %17 : vector<16x32xf32>
      %cst_16 = arith.constant dense<0.000000e+00> : vector<16xf32>
      %19 = vector.multi_reduction <add>, %18, %cst_16 [1] : vector<16x32xf32> to vector<16xf32>
      %20 = vector.shape_cast %19 : vector<16xf32> to vector<16x1xf32>
      %cst_17 = arith.constant 3.200000e+01 : f32
      %21 = vector.broadcast %cst_17 : f32 to vector<16x1xf32>
      %22 = arith.divf %20, %21 : vector<16x1xf32>
      %23 = vector.broadcast %22 : vector<16x1xf32> to vector<16x32xf32>
      %24 = arith.subf %18, %23 : vector<16x32xf32>
      %25 = arith.mulf %24, %24 : vector<16x32xf32>
      %cst_18 = arith.constant dense<0.000000e+00> : vector<16xf32>
      %26 = vector.multi_reduction <add>, %25, %cst_18 [1] : vector<16x32xf32> to vector<16xf32>
      %27 = vector.shape_cast %26 : vector<16xf32> to vector<16x1xf32>
      %cst_19 = arith.constant 3.200000e+01 : f32
      %28 = vector.broadcast %cst_19 : f32 to vector<16x1xf32>
      %29 = arith.divf %27, %28 : vector<16x1xf32>
      %30 = vector.broadcast %22 : vector<16x1xf32> to vector<16x32xf32>
      %31 = arith.subf %18, %30 : vector<16x32xf32>
      %cst_20 = arith.constant 9.99999974E-6 : f32
      %32 = vector.broadcast %cst_20 : f32 to vector<16x1xf32>
      %33 = arith.addf %29, %32 : vector<16x1xf32>
      %34 = math.rsqrt %33 : vector<16x1xf32>
      %35 = vector.broadcast %34 : vector<16x1xf32> to vector<16x32xf32>
      %36 = arith.mulf %31, %35 : vector<16x32xf32>
      %c0_21 = arith.constant 0 : index
      %c0_22 = arith.constant 0 : index
      %37 = vector.load %arg6[%c0_21, %c0_22] : memref<1x32xf32, #tpu.memory_space<vmem>>, vector<1x32xf32>
      %38 = vector.broadcast %37 : vector<1x32xf32> to vector<16x32xf32>
      %39 = arith.mulf %36, %38 : vector<16x32xf32>
      %c0_23 = arith.constant 0 : index
      %c0_24 = arith.constant 0 : index
      %40 = vector.load %arg7[%c0_23, %c0_24] : memref<1x32xf32, #tpu.memory_space<vmem>>, vector<1x32xf32>
      %41 = vector.broadcast %40 : vector<1x32xf32> to vector<16x32xf32>
      %42 = arith.addf %39, %41 : vector<16x32xf32>
      %43 = arith.truncf %42 : vector<16x32xf32> to vector<16x32xbf16>
      %c0_25 = arith.constant 0 : index
      %c0_26 = arith.constant 0 : index
      %44 = vector.load %arg8[%c0_25, %c0_26] : memref<16x32xbf16, #tpu.memory_space<vmem>>, vector<16x32xbf16>
      tpu.vector_store %arg8[%c0_25, %c0_26], %43 {strides = array<i32>} : memref<16x32xbf16, #tpu.memory_space<vmem>>, vector<16x32xbf16>,
    } else {
    }
    return
  }
  func.func @transform_0(%arg0: i32, %arg1: i32) -> (i32, i32) {
    %c0_i32 = arith.constant 0 : i32
    return %arg0, %arg1 : i32, i32
  }
  func.func @transform_1(%arg0: i32, %arg1: i32) -> (i32, i32) {
    %c0_i32 = arith.constant 0 : i32
    %c0_i32_0 = arith.constant 0 : i32
    return %arg1, %c0_i32 : i32, i32
  }
  func.func @transform_2(%arg0: i32, %arg1: i32) -> (i32, i32) {
    %c0_i32 = arith.constant 0 : i32
    %c0_i32_0 = arith.constant 0 : i32
    %c0_i32_1 = arith.constant 0 : i32
    return %c0_i32, %c0_i32_0 : i32, i32
  }
  func.func @transform_3(%arg0: i32, %arg1: i32) -> (i32, i32) {
    %c0_i32 = arith.constant 0 : i32
    %c0_i32_0 = arith.constant 0 : i32
    return %arg0, %c0_i32 : i32, i32
  }
  func.func @transform_4(%arg0: i32, %arg1: i32) -> (i32, i32) {
    %c0_i32 = arith.constant 0 : i32
    %c0_i32_0 = arith.constant 0 : i32
    %c0_i32_1 = arith.constant 0 : i32
    return %c0_i32, %c0_i32_0 : i32, i32
  }
  func.func @transform_5(%arg0: i32, %arg1: i32) -> (i32, i32) {
    %c0_i32 = arith.constant 0 : i32
    %c0_i32_0 = arith.constant 0 : i32
    %c0_i32_1 = arith.constant 0 : i32
    return %c0_i32, %c0_i32_0 : i32, i32
  }
  func.func @transform_6(%arg0: i32, %arg1: i32) -> (i32, i32) {
    %c0_i32 = arith.constant 0 : i32
    %c0_i32_0 = arith.constant 0 : i32
    return %arg0, %c0_i32 : i32, i32
  }
}

module attributes {stable_mosaic.version = 11 : i64} {
  func.func @_mlm_logits_kernel(%arg0: i32, %arg1: i32, %arg2: memref<16x32xbf16, #tpu.memory_space<vmem>>, %arg3: memref<32x128xbf16, #tpu.memory_space<vmem>>, %arg4: memref<1x128xf32, #tpu.memory_space<vmem>>, %arg5: memref<16x128xbf16, #tpu.memory_space<vmem>>, %arg6: memref<16x1xf32, #tpu.memory_space<vmem>>, %arg7: memref<16x1xf32, #tpu.memory_space<vmem>>, %arg8: memref<16x1xf32, #tpu.memory_space<vmem>>) attributes {dimension_semantics = [#tpu.dimension_semantics<parallel>, #tpu.dimension_semantics<arbitrary>], iteration_bounds = array<i64: 1, 1>, scalar_prefetch = 0 : i64, scratch_operands = 2 : i64, tpu.core_type = #tpu.core_type<tc>, window_params = [{transform_indices = @transform_0, window_bounds = array<i64: 16, 32>}, {transform_indices = @transform_1, window_bounds = array<i64: 32, 128>}, {transform_indices = @transform_2, window_bounds = array<i64: 1, 128>}, {transform_indices = @transform_3, window_bounds = array<i64: 16, 128>}, {transform_indices = @transform_4, window_bounds = array<i64: 16, 1>}]} {
    %c0_i32 = arith.constant 0 : i32
    %0 = arith.cmpi eq, %arg1, %c0_i32 : i32
    %1 = arith.extui %0 : i1 to i32
    %c0_i32_0 = arith.constant 0 : i32
    %2 = arith.cmpi ne, %1, %c0_i32_0 : i32
    scf.if %2 {
      %cst_22 = arith.constant 0xFF800000 : f32
      %31 = vector.broadcast %cst_22 : f32 to vector<16x1xf32>
      %c0_23 = arith.constant 0 : index
      %c0_24 = arith.constant 0 : index
      %32 = vector.load %arg7[%c0_23, %c0_24] : memref<16x1xf32, #tpu.memory_space<vmem>>, vector<16x1xf32>
      tpu.vector_store %arg7[%c0_23, %c0_24], %31 {strides = array<i32>} : memref<16x1xf32, #tpu.memory_space<vmem>>, vector<16x1xf32>,
      %cst_25 = arith.constant 0.000000e+00 : f32
      %33 = vector.broadcast %cst_25 : f32 to vector<16x1xf32>
      %c0_26 = arith.constant 0 : index
      %c0_27 = arith.constant 0 : index
      %34 = vector.load %arg8[%c0_26, %c0_27] : memref<16x1xf32, #tpu.memory_space<vmem>>, vector<16x1xf32>
      tpu.vector_store %arg8[%c0_26, %c0_27], %33 {strides = array<i32>} : memref<16x1xf32, #tpu.memory_space<vmem>>, vector<16x1xf32>,
    } else {
    }
    %c0 = arith.constant 0 : index
    %c0_1 = arith.constant 0 : index
    %3 = vector.load %arg2[%c0, %c0_1] : memref<16x32xbf16, #tpu.memory_space<vmem>>, vector<16x32xbf16>
    %c0_2 = arith.constant 0 : index
    %c0_3 = arith.constant 0 : index
    %4 = vector.load %arg3[%c0_2, %c0_3] : memref<32x128xbf16, #tpu.memory_space<vmem>>, vector<32x128xbf16>
    %cst = arith.constant dense<0.000000e+00> : vector<16x128xf32>
    %5 = tpu.matmul %3, %4, %cst {dimension_numbers = #tpu.dot_dimension_numbers<[1], [0], [0], [1], [0, 0, 1, 1], [], []>} : vector<16x32xbf16>, vector<32x128xbf16>, vector<16x128xf32> -> vector<16x128xf32>
    %c0_4 = arith.constant 0 : index
    %c0_5 = arith.constant 0 : index
    %6 = vector.load %arg4[%c0_4, %c0_5] : memref<1x128xf32, #tpu.memory_space<vmem>>, vector<1x128xf32>
    %7 = vector.broadcast %6 : vector<1x128xf32> to vector<16x128xf32>
    %8 = arith.addf %5, %7 : vector<16x128xf32>
    %9 = arith.truncf %8 : vector<16x128xf32> to vector<16x128xbf16>
    %c0_6 = arith.constant 0 : index
    %c0_7 = arith.constant 0 : index
    %10 = vector.load %arg5[%c0_6, %c0_7] : memref<16x128xbf16, #tpu.memory_space<vmem>>, vector<16x128xbf16>
    tpu.vector_store %arg5[%c0_6, %c0_7], %9 {strides = array<i32>} : memref<16x128xbf16, #tpu.memory_space<vmem>>, vector<16x128xbf16>,
    %c0_8 = arith.constant 0 : index
    %c0_9 = arith.constant 0 : index
    %11 = vector.load %arg7[%c0_8, %c0_9] : memref<16x1xf32, #tpu.memory_space<vmem>>, vector<16x1xf32>
    %cst_10 = arith.constant dense<0xFF800000> : vector<16xf32>
    %12 = vector.multi_reduction <maximumf>, %8, %cst_10 [1] : vector<16x128xf32> to vector<16xf32>
    %13 = vector.shape_cast %12 : vector<16xf32> to vector<16x1xf32>
    %14 = arith.maximumf %11, %13 : vector<16x1xf32>
    %c0_11 = arith.constant 0 : index
    %c0_12 = arith.constant 0 : index
    %15 = vector.load %arg8[%c0_11, %c0_12] : memref<16x1xf32, #tpu.memory_space<vmem>>, vector<16x1xf32>
    %c0_13 = arith.constant 0 : index
    %c0_14 = arith.constant 0 : index
    %16 = vector.load %arg7[%c0_13, %c0_14] : memref<16x1xf32, #tpu.memory_space<vmem>>, vector<16x1xf32>
    %17 = arith.subf %16, %14 : vector<16x1xf32>
    %18 = math.exp %17 : vector<16x1xf32>
    %19 = arith.mulf %15, %18 : vector<16x1xf32>
    %20 = vector.broadcast %14 : vector<16x1xf32> to vector<16x128xf32>
    %21 = arith.subf %8, %20 : vector<16x128xf32>
    %22 = math.exp %21 : vector<16x128xf32>
    %cst_15 = arith.constant dense<0.000000e+00> : vector<16xf32>
    %23 = vector.multi_reduction <add>, %22, %cst_15 [1] : vector<16x128xf32> to vector<16xf32>
    %24 = vector.shape_cast %23 : vector<16xf32> to vector<16x1xf32>
    %25 = arith.addf %19, %24 : vector<16x1xf32>
    %c0_16 = arith.constant 0 : index
    %c0_17 = arith.constant 0 : index
    %26 = vector.load %arg8[%c0_16, %c0_17] : memref<16x1xf32, #tpu.memory_space<vmem>>, vector<16x1xf32>
    tpu.vector_store %arg8[%c0_16, %c0_17], %25 {strides = array<i32>} : memref<16x1xf32, #tpu.memory_space<vmem>>, vector<16x1xf32>,
    %c0_18 = arith.constant 0 : index
    %c0_19 = arith.constant 0 : index
    %27 = vector.load %arg7[%c0_18, %c0_19] : memref<16x1xf32, #tpu.memory_space<vmem>>, vector<16x1xf32>
    tpu.vector_store %arg7[%c0_18, %c0_19], %14 {strides = array<i32>} : memref<16x1xf32, #tpu.memory_space<vmem>>, vector<16x1xf32>,
    %c0_i32_20 = arith.constant 0 : i32
    %28 = arith.cmpi eq, %arg1, %c0_i32_20 : i32
    %29 = arith.extui %28 : i1 to i32
    %c0_i32_21 = arith.constant 0 : i32
    %30 = arith.cmpi ne, %29, %c0_i32_21 : i32
    scf.if %30 {
      %c0_22 = arith.constant 0 : index
      %c0_23 = arith.constant 0 : index
      %31 = vector.load %arg7[%c0_22, %c0_23] : memref<16x1xf32, #tpu.memory_space<vmem>>, vector<16x1xf32>
      %c0_24 = arith.constant 0 : index
      %c0_25 = arith.constant 0 : index
      %32 = vector.load %arg8[%c0_24, %c0_25] : memref<16x1xf32, #tpu.memory_space<vmem>>, vector<16x1xf32>
      %33 = math.log %32 : vector<16x1xf32>
      %34 = arith.addf %31, %33 : vector<16x1xf32>
      %c0_26 = arith.constant 0 : index
      %c0_27 = arith.constant 0 : index
      %35 = vector.load %arg6[%c0_26, %c0_27] : memref<16x1xf32, #tpu.memory_space<vmem>>, vector<16x1xf32>
      tpu.vector_store %arg6[%c0_26, %c0_27], %34 {strides = array<i32>} : memref<16x1xf32, #tpu.memory_space<vmem>>, vector<16x1xf32>,
    } else {
    }
    return
  }
  func.func @transform_0(%arg0: i32, %arg1: i32) -> (i32, i32) {
    %c0_i32 = arith.constant 0 : i32
    %c0_i32_0 = arith.constant 0 : i32
    return %arg0, %c0_i32 : i32, i32
  }
  func.func @transform_1(%arg0: i32, %arg1: i32) -> (i32, i32) {
    %c0_i32 = arith.constant 0 : i32
    %c0_i32_0 = arith.constant 0 : i32
    return %c0_i32, %arg1 : i32, i32
  }
  func.func @transform_2(%arg0: i32, %arg1: i32) -> (i32, i32) {
    %c0_i32 = arith.constant 0 : i32
    %c0_i32_0 = arith.constant 0 : i32
    return %c0_i32, %arg1 : i32, i32
  }
  func.func @transform_3(%arg0: i32, %arg1: i32) -> (i32, i32) {
    %c0_i32 = arith.constant 0 : i32
    return %arg0, %arg1 : i32, i32
  }
  func.func @transform_4(%arg0: i32, %arg1: i32) -> (i32, i32) {
    %c0_i32 = arith.constant 0 : i32
    %c0_i32_0 = arith.constant 0 : i32
    return %arg0, %c0_i32 : i32, i32
  }
}

module attributes {stable_mosaic.version = 11 : i64} {
  func.func @_sub_lse_kernel(%arg0: i32, %arg1: i32, %arg2: memref<16x128xbf16, #tpu.memory_space<vmem>>, %arg3: memref<16x1xf32, #tpu.memory_space<vmem>>, %arg4: memref<16x128xbf16, #tpu.memory_space<vmem>>) attributes {dimension_semantics = [#tpu.dimension_semantics<parallel>, #tpu.dimension_semantics<parallel>], iteration_bounds = array<i64: 1, 1>, scalar_prefetch = 0 : i64, scratch_operands = 0 : i64, tpu.core_type = #tpu.core_type<tc>, window_params = [{transform_indices = @transform_0, window_bounds = array<i64: 16, 128>}, {transform_indices = @transform_1, window_bounds = array<i64: 16, 1>}, {transform_indices = @transform_2, window_bounds = array<i64: 16, 128>}]} {
    %c0 = arith.constant 0 : index
    %c0_0 = arith.constant 0 : index
    %0 = vector.load %arg2[%c0, %c0_0] : memref<16x128xbf16, #tpu.memory_space<vmem>>, vector<16x128xbf16>
    %1 = arith.extf %0 : vector<16x128xbf16> to vector<16x128xf32>
    %c0_1 = arith.constant 0 : index
    %c0_2 = arith.constant 0 : index
    %2 = vector.load %arg3[%c0_1, %c0_2] : memref<16x1xf32, #tpu.memory_space<vmem>>, vector<16x1xf32>
    %3 = vector.broadcast %2 : vector<16x1xf32> to vector<16x128xf32>
    %4 = arith.subf %1, %3 : vector<16x128xf32>
    %5 = arith.truncf %4 : vector<16x128xf32> to vector<16x128xbf16>
    %c0_3 = arith.constant 0 : index
    %c0_4 = arith.constant 0 : index
    %6 = vector.load %arg4[%c0_3, %c0_4] : memref<16x128xbf16, #tpu.memory_space<vmem>>, vector<16x128xbf16>
    tpu.vector_store %arg4[%c0_3, %c0_4], %5 {strides = array<i32>} : memref<16x128xbf16, #tpu.memory_space<vmem>>, vector<16x128xbf16>,
    return
  }
  func.func @transform_0(%arg0: i32, %arg1: i32) -> (i32, i32) {
    %c0_i32 = arith.constant 0 : i32
    return %arg0, %arg1 : i32, i32
  }
  func.func @transform_1(%arg0: i32, %arg1: i32) -> (i32, i32) {
    %c0_i32 = arith.constant 0 : i32
    %c0_i32_0 = arith.constant 0 : i32
    return %arg0, %c0_i32 : i32, i32
  }
  func.func @transform_2(%arg0: i32, %arg1: i32) -> (i32, i32) {
    %c0_i32 = arith.constant 0 : i32
    return %arg0, %arg1 : i32, i32
  }
}

</mosaic_0001>

<llo_original>
// kernel: bert_lm_forward.15
$region0: #{bert_lm_forward.15}
  #allocation0 [shape = 'u32[]', space=smem, size = 0x4, offset = 0x4, fixed_abs, tag = 'smem constant byte address 0x4 - core index']
  #allocation1 [shape = 'u32[72,128]{1,0:T(1,128)}', space=vmem, size = 0x9000, scoped, tag = 'internal scratch']
  #allocation2 [shape = 'f32[16,128]{1,0:T(8,128)}', space=vmem, size = 0x2000, scoped, tag = 'scratch operand']
  %s0 = inlined_call_operand.vmem [shape: bf16[16,32], index: 0, kind: input, shape index: {}]
  %s1 = inlined_call_operand.vmem [shape: bf16[32,128], index: 1, kind: input, shape index: {}]
  %s2 = inlined_call_operand.vmem [shape: f32[1,128], index: 2, kind: input, shape index: {}]
  %s3 = inlined_call_operand.vmem [shape: bf16[16,128], index: 3, kind: output, shape index: {}]
  %s4 = sld [smem:[#allocation0]]
  $region30: #{bert_lm_forward.15} parent=0
    _
  %s6 = ssub.s32 1, %s4
  %s7 = scalar_select 0, %s6, %s4
  // Predicated region
  $region2: #{bert_lm_forward.15} parent=0 // pred_check
    _
  $region3: #{bert_lm_forward.15} parent=0 // pred_check_branch
    %9 = sbr.rel (0) target = $region5
  $region4: #{bert_lm_forward.15} parent=0 // pred_region
    _
  $region5: #{bert_lm_forward.15} parent=0 // pred_fallthru
    _
  // Predicated region
  $region6: #{bert_lm_forward.15} parent=0 // pred_check
    _
  $region7: #{bert_lm_forward.15} parent=0 // pred_check_branch
    %11 = sbr.rel (0) target = $region9
  $region8: #{bert_lm_forward.15} parent=0 // pred_region
    _
  $region9: #{bert_lm_forward.15} parent=0 // pred_fallthru
    _
  // Predicated region
  $region10: #{bert_lm_forward.15} parent=0 // pred_check
    _
  $region11: #{bert_lm_forward.15} parent=0 // pred_check_branch
    %13 = sbr.rel (0) target = $region13
  $region12: #{bert_lm_forward.15} parent=0 // pred_region
    _
  $region13: #{bert_lm_forward.15} parent=0 // pred_fallthru
    _
  %p15 = scmp.eq.s32.totalorder 0, 0
  // Predicated region
  $region14: #{bert_lm_forward.15} parent=0 // pred_check
    %p16 = pneg %p15
  $region15: #{bert_lm_forward.15} parent=0 // pred_check_branch
    %18 = sbr.rel (%p16) target = $region17
  $region16: #{bert_lm_forward.15} parent=0 // pred_region
    %19 = vst [vmem:[#allocation2] sm:$0xff] 0.0
    %20 = vst [vmem:[#allocation2 + $0x8] sm:$0xff] 0.0
  $region17: #{bert_lm_forward.15} parent=0 // pred_fallthru
    _
  %v21 = vld [vmem:[#allocation2] sm:$0xff]
  %v22 = vld [vmem:[#allocation2 + $0x8] sm:$0xff]
  %v23 = vld [vmem:[%s0] sm:$0xf]
  %v24 = vld [vmem:[%s0 + $0x4] sm:$0xf]
  %v25 = vld [vmem:[%s1] sm:$0xf]
  %v26 = vld [vmem:[%s1 + $0x4] sm:$0xf]
  %v27 = vld [vmem:[%s1 + $0x8] sm:$0xf]
  %v28 = vld [vmem:[%s1 + $0xc] sm:$0xf]
  %v31 = vunpack.c.l.b16 %v23
  %v32 = vunpack.c.l.b16 %v24
  %v33 = vpack.c.b16 %v32, %v31
  %v38 = vunpack.c.l.b16 %v25
  %v39 = vunpack.c.l.b16 %v26
  %v40 = vunpack.c.l.b16 %v27
  %v41 = vunpack.c.l.b16 %v28
  %v42 = vpack.c.b16 %v39, %v38
  %v43 = vpack.c.b16 %v41, %v40
  %vm46 = vcmask 261120
  %v48 = vsel %vm46, %v33, 0
  %50 = vmatpush.bf16.msra.mxu0 0
  %51 = vmatpush.bf16.msra.mxu0 0
  %52 = vmatpush.bf16.msra.mxu0 0
  %53 = vmatpush.bf16.msra.mxu0 0
  %54 = vmatpush.bf16.msra.mxu0 0
  %55 = vmatpush.bf16.msra.mxu0 0
  %56 = vmatpush.bf16.msra.mxu0 %v43
  %57 = vmatpush.bf16.msra.mxu0 %v42
  %58 = vmatmul.bf16.gmra.mxu0 %v48
  %v59 = vpop.f32.mrf.mxu0
  %v60 = vadd.f32 0.0, %v59
  %v61 = vpop.f32.mrf.mxu0
  %v62 = vadd.f32 0.0, %v61
  %63 = vdwg.mxu0
  %v64 = vadd.f32 %v21, %v60
  %v65 = vadd.f32 %v22, %v62
  %66 = vst [vmem:[#allocation2] sm:$0xff] %v64
  %67 = vst [vmem:[#allocation2 + $0x8] sm:$0xff] %v65
  // Predicated region
  $region18: #{bert_lm_forward.15} parent=0 // pred_check
    %p68 = pneg %p15
  $region19: #{bert_lm_forward.15} parent=0 // pred_check_branch
    %70 = sbr.rel (%p68) target = $region21
  $region20: #{bert_lm_forward.15} parent=0 // pred_region
    %v71 = vld [vmem:[#allocation2] sm:$0xff]
    %v72 = vld [vmem:[#allocation2 + $0x8] sm:$0xff]
    %v73 = vld [vmem:[%s2] sm:$0x1]
    %v75 = vperm.slane %v73, 0
    %v77 = vadd.f32 %v71, %v75
    %v78 = vadd.f32 %v72, %v75
    %v79 = vmul.f32 %v77, %v77
    %v80 = vmul.f32 %v78, %v78
    %v81 = vmul.f32 %v77, %v79
    %v82 = vmul.f32 %v78, %v80
    %v83 = vmul.f32 %v81, 0.044715
    %v84 = vmul.f32 %v82, 0.044715
    %v85 = vadd.f32 %v77, %v83
    %v86 = vadd.f32 %v78, %v84
    %v87 = vmul.f32 %v85, 0.7978846
    %v88 = vmul.f32 %v86, 0.7978846
    %v89 = vtanh.pop %v87
    %v90 = vtanh.pop %v88
    %v91 = vadd.f32 %v89, 1.0
    %v92 = vadd.f32 %v90, 1.0
    %v93 = vmul.f32 %v91, 0.5
    %v94 = vmul.f32 %v92, 0.5
    %v95 = vmul.f32 %v77, %v93
    %v96 = vmul.f32 %v78, %v94
    %v97 = vpack.c.bf16 %v95, %v95
    %v98 = vpack.c.bf16 %v96, %v96
    %99 = vst [vmem:[%s3] sm:$0xf] %v97
    %100 = vst [vmem:[%s3 + $0x4] sm:$0xf] %v98
  $region21: #{bert_lm_forward.15} parent=0 // pred_fallthru
    _
  // Predicated region
  $region22: #{bert_lm_forward.15} parent=0 // pred_check
    _
  $region23: #{bert_lm_forward.15} parent=0 // pred_check_branch
    %102 = sbr.rel (0) target = $region25
  $region24: #{bert_lm_forward.15} parent=0 // pred_region
    _
  $region25: #{bert_lm_forward.15} parent=0 // pred_fallthru
    _
  // Predicated region
  $region26: #{bert_lm_forward.15} parent=0 // pred_check
    _
  $region27: #{bert_lm_forward.15} parent=0 // pred_check_branch
    %104 = sbr.rel (0) target = $region29
  $region28: #{bert_lm_forward.15} parent=0 // pred_region
    _
  $region29: #{bert_lm_forward.15} parent=0 // pred_fallthru
    _

// kernel: bert_lm_forward.12
$region0: #{bert_lm_forward.12}
  #allocation0 [shape = 'u32[]', space=smem, size = 0x4, offset = 0x4, fixed_abs, tag = 'smem constant byte address 0x4 - core index']
  #allocation1 [shape = 'u32[72,128]{1,0:T(1,128)}', space=vmem, size = 0x9000, scoped, tag = 'internal scratch']
  #allocation2 [shape = 'f32[16,96]{1,0:T(8,128)}', space=vmem, size = 0x2000, scoped, tag = 'scratch operand']
  %s0 = inlined_call_operand.vmem [shape: bf16[16,32], index: 0, kind: input, shape index: {}]
  %s1 = inlined_call_operand.vmem [shape: bf16[32,96], index: 1, kind: input, shape index: {}]
  %s2 = inlined_call_operand.vmem [shape: f32[1,96], index: 2, kind: input, shape index: {}]
  %s3 = inlined_call_operand.vmem [shape: bf16[16,96], index: 3, kind: output, shape index: {}]
  %s4 = sld [smem:[#allocation0]]
  $region30: #{bert_lm_forward.12} parent=0
    _
  %s6 = ssub.s32 1, %s4
  %s7 = scalar_select 0, %s6, %s4
  // Predicated region
  $region2: #{bert_lm_forward.12} parent=0 // pred_check
    _
  $region3: #{bert_lm_forward.12} parent=0 // pred_check_branch
    %9 = sbr.rel (0) target = $region5
  $region4: #{bert_lm_forward.12} parent=0 // pred_region
    _
  $region5: #{bert_lm_forward.12} parent=0 // pred_fallthru
    _
  // Predicated region
  $region6: #{bert_lm_forward.12} parent=0 // pred_check
    _
  $region7: #{bert_lm_forward.12} parent=0 // pred_check_branch
    %11 = sbr.rel (0) target = $region9
  $region8: #{bert_lm_forward.12} parent=0 // pred_region
    _
  $region9: #{bert_lm_forward.12} parent=0 // pred_fallthru
    _
  // Predicated region
  $region10: #{bert_lm_forward.12} parent=0 // pred_check
    _
  $region11: #{bert_lm_forward.12} parent=0 // pred_check_branch
    %13 = sbr.rel (0) target = $region13
  $region12: #{bert_lm_forward.12} parent=0 // pred_region
    _
  $region13: #{bert_lm_forward.12} parent=0 // pred_fallthru
    _
  %p15 = scmp.eq.s32.totalorder 0, 0
  // Predicated region
  $region14: #{bert_lm_forward.12} parent=0 // pred_check
    %p16 = pneg %p15
  $region15: #{bert_lm_forward.12} parent=0 // pred_check_branch
    %18 = sbr.rel (%p16) target = $region17
  $region16: #{bert_lm_forward.12} parent=0 // pred_region
    %vm19 = vcmask 785408
    %20 = vst.msk [vmem:[#allocation2] sm:$0xff] %vm19, 0.0
    %21 = vst.msk [vmem:[#allocation2 + $0x8] sm:$0xff] %vm19, 0.0
  $region17: #{bert_lm_forward.12} parent=0 // pred_fallthru
    _
  %v22 = vld [vmem:[#allocation2] sm:$0xff]
  %v23 = vld [vmem:[#allocation2 + $0x8] sm:$0xff]
  %v24 = vld [vmem:[%s0] sm:$0xf]
  %v25 = vld [vmem:[%s0 + $0x4] sm:$0xf]
  %v26 = vld [vmem:[%s1] sm:$0xf]
  %v27 = vld [vmem:[%s1 + $0x4] sm:$0xf]
  %v28 = vld [vmem:[%s1 + $0x8] sm:$0xf]
  %v29 = vld [vmem:[%s1 + $0xc] sm:$0xf]
  %v32 = vunpack.c.l.b16 %v24
  %v33 = vunpack.c.l.b16 %v25
  %v34 = vpack.c.b16 %v33, %v32
  %v39 = vunpack.c.l.b16 %v26
  %v40 = vunpack.c.l.b16 %v27
  %v41 = vunpack.c.l.b16 %v28
  %v42 = vunpack.c.l.b16 %v29
  %v43 = vpack.c.b16 %v40, %v39
  %v44 = vpack.c.b16 %v42, %v41
  %vm47 = vcmask 261120
  %v49 = vsel %vm47, %v34, 0
  %51 = vmatpush.bf16.msra.mxu0 0
  %52 = vmatpush.bf16.msra.mxu0 0
  %53 = vmatpush.bf16.msra.mxu0 0
  %54 = vmatpush.bf16.msra.mxu0 0
  %55 = vmatpush.bf16.msra.mxu0 0
  %56 = vmatpush.bf16.msra.mxu0 0
  %57 = vmatpush.bf16.msra.mxu0 %v44
  %58 = vmatpush.bf16.msra.mxu0 %v43
  %59 = vmatmul.bf16.gmra.mxu0 %v49
  %v60 = vpop.f32.mrf.mxu0
  %v61 = vadd.f32 0.0, %v60
  %v62 = vpop.f32.mrf.mxu0
  %v63 = vadd.f32 0.0, %v62
  %64 = vdwg.mxu0
  %v65 = vadd.f32 %v22, %v61
  %v66 = vadd.f32 %v23, %v63
  %vm67 = vcmask 785408
  %68 = vst.msk [vmem:[#allocation2] sm:$0xff] %vm67, %v65
  %69 = vst.msk [vmem:[#allocation2 + $0x8] sm:$0xff] %vm67, %v66
  // Predicated region
  $region18: #{bert_lm_forward.12} parent=0 // pred_check
    %p70 = pneg %p15
  $region19: #{bert_lm_forward.12} parent=0 // pred_check_branch
    %72 = sbr.rel (%p70) target = $region21
  $region20: #{bert_lm_forward.12} parent=0 // pred_region
    %v73 = vld [vmem:[#allocation2] sm:$0xff]
    %v74 = vld [vmem:[#allocation2 + $0x8] sm:$0xff]
    %v75 = vld [vmem:[%s2] sm:$0x1]
    %v77 = vperm.slane %v75, 0
    %v79 = vadd.f32 %v73, %v77
    %v80 = vadd.f32 %v74, %v77
    %v81 = vpack.c.bf16 %v79, %v79
    %v82 = vpack.c.bf16 %v80, %v80
    %vm83 = vcmask 781312
    %84 = vst.msk [vmem:[%s3] sm:$0xf] %vm83, %v81
    %85 = vst.msk [vmem:[%s3 + $0x4] sm:$0xf] %vm83, %v82
  $region21: #{bert_lm_forward.12} parent=0 // pred_fallthru
    _
  // Predicated region
  $region22: #{bert_lm_forward.12} parent=0 // pred_check
    _
  $region23: #{bert_lm_forward.12} parent=0 // pred_check_branch
    %87 = sbr.rel (0) target = $region25
  $region24: #{bert_lm_forward.12} parent=0 // pred_region
    _
  $region25: #{bert_lm_forward.12} parent=0 // pred_fallthru
    _
  // Predicated region
  $region26: #{bert_lm_forward.12} parent=0 // pred_check
    _
  $region27: #{bert_lm_forward.12} parent=0 // pred_check_branch
    %89 = sbr.rel (0) target = $region29
  $region28: #{bert_lm_forward.12} parent=0 // pred_region
    _
  $region29: #{bert_lm_forward.12} parent=0 // pred_fallthru
    _

// kernel: bert_lm_forward.14
$region0: #{bert_lm_forward.14}
  #allocation0 [shape = 'u32[]', space=smem, size = 0x4, offset = 0x4, fixed_abs, tag = 'smem constant byte address 0x4 - core index']
  #allocation1 [shape = 'u32[72,128]{1,0:T(1,128)}', space=vmem, size = 0x9000, scoped, tag = 'internal scratch']
  #allocation2 [shape = 'f32[16,32]{1,0:T(8,128)}', space=vmem, size = 0x2000, scoped, tag = 'scratch operand']
  %s0 = inlined_call_operand.vmem [shape: bf16[16,32], index: 0, kind: input, shape index: {}]
  %s1 = inlined_call_operand.vmem [shape: bf16[32,32], index: 1, kind: input, shape index: {}]
  %s2 = inlined_call_operand.vmem [shape: f32[1,32], index: 2, kind: input, shape index: {}]
  %s3 = inlined_call_operand.vmem [shape: bf16[16,32], index: 3, kind: input, shape index: {}]
  %s4 = inlined_call_operand.vmem [shape: f32[1,32], index: 4, kind: input, shape index: {}]
  %s5 = inlined_call_operand.vmem [shape: f32[1,32], index: 5, kind: input, shape index: {}]
  %s6 = inlined_call_operand.vmem [shape: bf16[16,32], index: 6, kind: output, shape index: {}]
  %s7 = sld [smem:[#allocation0]]
  $region42: #{bert_lm_forward.14} parent=0
    _
  %s9 = ssub.s32 1, %s7
  %s10 = scalar_select 0, %s9, %s7
  // Predicated region
  $region2: #{bert_lm_forward.14} parent=0 // pred_check
    _
  $region3: #{bert_lm_forward.14} parent=0 // pred_check_branch
    %12 = sbr.rel (0) target = $region5
  $region4: #{bert_lm_forward.14} parent=0 // pred_region
    _
  $region5: #{bert_lm_forward.14} parent=0 // pred_fallthru
    _
  // Predicated region
  $region6: #{bert_lm_forward.14} parent=0 // pred_check
    _
  $region7: #{bert_lm_forward.14} parent=0 // pred_check_branch
    %14 = sbr.rel (0) target = $region9
  $region8: #{bert_lm_forward.14} parent=0 // pred_region
    _
  $region9: #{bert_lm_forward.14} parent=0 // pred_fallthru
    _
  // Predicated region
  $region10: #{bert_lm_forward.14} parent=0 // pred_check
    _
  $region11: #{bert_lm_forward.14} parent=0 // pred_check_branch
    %16 = sbr.rel (0) target = $region13
  $region12: #{bert_lm_forward.14} parent=0 // pred_region
    _
  $region13: #{bert_lm_forward.14} parent=0 // pred_fallthru
    _
  // Predicated region
  $region14: #{bert_lm_forward.14} parent=0 // pred_check
    _
  $region15: #{bert_lm_forward.14} parent=0 // pred_check_branch
    %18 = sbr.rel (0) target = $region17
  $region16: #{bert_lm_forward.14} parent=0 // pred_region
    _
  $region17: #{bert_lm_forward.14} parent=0 // pred_fallthru
    _
  // Predicated region
  $region18: #{bert_lm_forward.14} parent=0 // pred_check
    _
  $region19: #{bert_lm_forward.14} parent=0 // pred_check_branch
    %20 = sbr.rel (0) target = $region21
  $region20: #{bert_lm_forward.14} parent=0 // pred_region
    _
  $region21: #{bert_lm_forward.14} parent=0 // pred_fallthru
    _
  // Predicated region
  $region22: #{bert_lm_forward.14} parent=0 // pred_check
    _
  $region23: #{bert_lm_forward.14} parent=0 // pred_check_branch
    %22 = sbr.rel (0) target = $region25
  $region24: #{bert_lm_forward.14} parent=0 // pred_region
    _
  $region25: #{bert_lm_forward.14} parent=0 // pred_fallthru
    _
  %p24 = scmp.eq.s32.totalorder 0, 0
  // Predicated region
  $region26: #{bert_lm_forward.14} parent=0 // pred_check
    %p25 = pneg %p24
  $region27: #{bert_lm_forward.14} parent=0 // pred_check_branch
    %27 = sbr.rel (%p25) target = $region29
  $region28: #{bert_lm_forward.14} parent=0 // pred_region
    %vm28 = vcmask 261120
    %29 = vst.msk [vmem:[#allocation2] sm:$0xff] %vm28, 0.0
    %30 = vst.msk [vmem:[#allocation2 + $0x8] sm:$0xff] %vm28, 0.0
  $region29: #{bert_lm_forward.14} parent=0 // pred_fallthru
    _
  %v31 = vld [vmem:[#allocation2] sm:$0xff]
  %v32 = vld [vmem:[#allocation2 + $0x8] sm:$0xff]
  %v33 = vld [vmem:[%s0] sm:$0xf]
  %v34 = vld [vmem:[%s0 + $0x4] sm:$0xf]
  %v35 = vld [vmem:[%s1] sm:$0xf]
  %v36 = vld [vmem:[%s1 + $0x4] sm:$0xf]
  %v37 = vld [vmem:[%s1 + $0x8] sm:$0xf]
  %v38 = vld [vmem:[%s1 + $0xc] sm:$0xf]
  %v41 = vunpack.c.l.b16 %v33
  %v42 = vunpack.c.l.b16 %v34
  %v43 = vpack.c.b16 %v42, %v41
  %v48 = vunpack.c.l.b16 %v35
  %v49 = vunpack.c.l.b16 %v36
  %v50 = vunpack.c.l.b16 %v37
  %v51 = vunpack.c.l.b16 %v38
  %v52 = vpack.c.b16 %v49, %v48
  %v53 = vpack.c.b16 %v51, %v50
  %vm56 = vcmask 261120
  %v58 = vsel %vm56, %v43, 0
  %60 = vmatpush.bf16.msra.mxu0 0
  %61 = vmatpush.bf16.msra.mxu0 0
  %62 = vmatpush.bf16.msra.mxu0 0
  %63 = vmatpush.bf16.msra.mxu0 0
  %64 = vmatpush.bf16.msra.mxu0 0
  %65 = vmatpush.bf16.msra.mxu0 0
  %66 = vmatpush.bf16.msra.mxu0 %v53
  %67 = vmatpush.bf16.msra.mxu0 %v52
  %68 = vmatmul.bf16.gmra.mxu0 %v58
  %v69 = vpop.f32.mrf.mxu0
  %v70 = vadd.f32 0.0, %v69
  %v71 = vpop.f32.mrf.mxu0
  %v72 = vadd.f32 0.0, %v71
  %73 = vdwg.mxu0
  %v74 = vadd.f32 %v31, %v70
  %v75 = vadd.f32 %v32, %v72
  %76 = vst.msk [vmem:[#allocation2] sm:$0xff] %vm56, %v74
  %77 = vst.msk [vmem:[#allocation2 + $0x8] sm:$0xff] %vm56, %v75
  // Predicated region
  $region30: #{bert_lm_forward.14} parent=0 // pred_check
    %p78 = pneg %p24
  $region31: #{bert_lm_forward.14} parent=0 // pred_check_branch
    %80 = sbr.rel (%p78) target = $region33
  $region32: #{bert_lm_forward.14} parent=0 // pred_region
    %v81 = vld [vmem:[#allocation2] sm:$0xff]
    %v82 = vld [vmem:[#allocation2 + $0x8] sm:$0xff]
    %v83 = vld [vmem:[%s2] sm:$0x1]
    %v85 = vperm.slane %v83, 0
    %v87 = vadd.f32 %v81, %v85
    %v88 = vadd.f32 %v82, %v85
    %v89 = vld [vmem:[%s3] sm:$0xf]
    %v90 = vld [vmem:[%s3 + $0x4] sm:$0xf]
    %v91 = vunpack.c.l.bf16 %v89
    %v92 = vunpack.c.l.bf16 %v90
    %v93 = vadd.f32 %v87, %v91
    %v94 = vadd.f32 %v88, %v92
    %v95 = vsel %vm56, %v93, 0.0
    %96 = vadd.xlane.f32.xlu0 %v95
    %v97 = vpop.xlane.xlu0 %96
    %v98 = vsel %vm56, %v94, 0.0
    %99 = vadd.xlane.f32.xlu0 %v98
    %v100 = vpop.xlane.xlu0 %99
    %v101 = vrcp.pop 32.0
    %v102 = vmul.f32 32.0, %v101
    %v103 = vsub.f32 1.0, %v102
    %v104 = vmul.f32 %v101, %v103
    %v105 = vadd.f32 %v101, %v104
    %vm106 = vweird.f32 %v101
    %v107 = vsel %vm106, %v101, %v105
    %v108 = vmul.f32 %v97, %v107
    %v109 = vmul.f32 %v100, %v107
    %v110 = vsub.f32 %v93, %v108
    %v111 = vsub.f32 %v94, %v109
    %v112 = vmul.f32 %v110, %v110
    %v113 = vmul.f32 %v111, %v111
    %v114 = vsel %vm56, %v112, 0.0
    %115 = vadd.xlane.f32.xlu0 %v114
    %v116 = vpop.xlane.xlu0 %115
    %v117 = vsel %vm56, %v113, 0.0
    %118 = vadd.xlane.f32.xlu0 %v117
    %v119 = vpop.xlane.xlu0 %118
    %v120 = vmul.f32 %v116, %v107
    %v121 = vmul.f32 %v119, %v107
    %v122 = vadd.f32 %v120, 1e-05
    %v123 = vadd.f32 %v121, 1e-05
    %v124 = vrsqrt.pop %v122
    %v125 = vmul.f32 %v124, %v122
    %v126 = vmul.f32 %v125, %v124
    %v127 = vmul.f32 0.5, %v126
    %v128 = vsub.f32 1.5, %v127
    %v129 = vmul.f32 %v124, %v128
    %vm130 = vweird.f32 %v122
    %vm131 = vweird.f32 %v124
    %vm132 = vmor %vm130, %vm131
    %v133 = vsel %vm132, %v124, %v129
    %v134 = vrsqrt.pop %v123
    %v135 = vmul.f32 %v134, %v123
    %v136 = vmul.f32 %v135, %v134
    %v137 = vmul.f32 0.5, %v136
    %v138 = vsub.f32 1.5, %v137
    %v139 = vmul.f32 %v134, %v138
    %vm140 = vweird.f32 %v123
    %vm141 = vweird.f32 %v134
    %vm142 = vmor %vm140, %vm141
    %v143 = vsel %vm142, %v134, %v139
    %v144 = vmul.f32 %v110, %v133
    %v145 = vmul.f32 %v111, %v143
    %v146 = vld [vmem:[%s4] sm:$0x1]
    %v148 = vperm.slane %v146, 0
    %v150 = vmul.f32 %v144, %v148
    %v151 = vmul.f32 %v145, %v148
    %v152 = vld [vmem:[%s5] sm:$0x1]
    %v154 = vperm.slane %v152, 0
    %v156 = vadd.f32 %v150, %v154
    %v157 = vadd.f32 %v151, %v154
    %v158 = vpack.c.bf16 %v156, %v156
    %v159 = vpack.c.bf16 %v157, %v157
    %vm160 = vcmask 257024
    %161 = vst.msk [vmem:[%s6] sm:$0xf] %vm160, %v158
    %162 = vst.msk [vmem:[%s6 + $0x4] sm:$0xf] %vm160, %v159
  $region33: #{bert_lm_forward.14} parent=0 // pred_fallthru
    _
  // Predicated region
  $region34: #{bert_lm_forward.14} parent=0 // pred_check
    _
  $region35: #{bert_lm_forward.14} parent=0 // pred_check_branch
    %164 = sbr.rel (0) target = $region37
  $region36: #{bert_lm_forward.14} parent=0 // pred_region
    _
  $region37: #{bert_lm_forward.14} parent=0 // pred_fallthru
    _
  // Predicated region
  $region38: #{bert_lm_forward.14} parent=0 // pred_check
    _
  $region39: #{bert_lm_forward.14} parent=0 // pred_check_branch
    %166 = sbr.rel (0) target = $region41
  $region40: #{bert_lm_forward.14} parent=0 // pred_region
    _
  $region41: #{bert_lm_forward.14} parent=0 // pred_fallthru
    _

// kernel: bert_lm_forward.13
$region0: #{bert_lm_forward.13}
  #allocation0 [shape = 'u32[]', space=smem, size = 0x4, offset = 0x4, fixed_abs, tag = 'smem constant byte address 0x4 - core index']
  #allocation1 [shape = 'u32[72,128]{1,0:T(1,128)}', space=vmem, size = 0x9000, scoped, tag = 'internal scratch']
  %s0 = inlined_call_operand.vmem [shape: bf16[2,8,96], index: 0, kind: input, shape index: {}, may-alias: {0,1}]
  %s1 = inlined_call_operand.vmem [shape: bf16[2,8,96], index: 1, kind: input, shape index: {}, may-alias: {0,1}]
  %s2 = inlined_call_operand.vmem [shape: f32[2,1,8], index: 2, kind: input, shape index: {}]
  %s3 = inlined_call_operand.vmem [shape: bf16[2,8,32], index: 3, kind: output, shape index: {}]
  %s4 = sld [smem:[#allocation0]]
  $region45: #{bert_lm_forward.13} parent=0
    _
  %s6 = ssub.s32 1, %s4
  %s7 = scalar_select 0, %s6, %s4
  loop: start=0, step=1, limit=4
  $region2: #{bert_lm_forward.13} parent=0 // loop_pre_header
    _
  $region3: #{bert_lm_forward.13} parent=0 // loop_header
    %s9 = sphi 0, %s13
    %p10 = scmp.ge.s32.totalorder %s9, 4
    %s16 = sphi 0, %s28
    %s17 = sphi 0, %s24
    %s18 = sphi 0, %s16
    %s19 = sphi 0, %s17
    %s20 = sphi 0, %s18
    %s21 = sphi 0, %s19
    %s33 = sphi 0, %s35
    %s36 = sphi 0, %s33
    %s37 = sphi 0, %s36
    %s53 = sphi 0, %s37
    %s59 = sphi 0, %s61
    %s62 = sphi 0, %s59
    %s63 = sphi 0, %s62
    %s79 = sphi 0, %s63
    %s85 = sphi 0, %s87
    %s88 = sphi 0, %s85
    %s89 = sphi 0, %s88
    %s105 = sphi 0, %s89
    %s113 = sphi 0, %s115
    %s116 = sphi 0, %s113
    %s117 = sphi 0, %s116
    %s133 = sphi 0, %s117
  $region4: #{bert_lm_forward.13} parent=0 // loop_header_branch
    %12 = sbr.rel (%p10) target = $region8
  $region5: #{bert_lm_forward.13} parent=0 // loop_body
    %s14 = ssub.s32 %s9, 1
    %s15 = ssub.s32 %s9, 2
    %s22 = sadd.s32 1, %s17
    %p23 = scmp.ge.s32.totalorder %s22, 1
    %s24 = scalar_select %p23, 0, %s22
    %s25 = sadd.s32 1, %s16
    %s26 = scalar_select %p23, %s25, %s16
    %p27 = scmp.ge.s32.totalorder %s26, 2
    %s28 = scalar_select %p27, 0, %s26
    %s29 = ssub.s32 %s16, %s28
    %s30 = ssub.s32 %s17, %s24
    %s31 = sor.u32 %s29, %s30
    %p32 = scmp.eq.s32.totalorder %s31, 0
    %s34 = sadd.s32 %s33, 1
    %s35 = scalar_select %p32, %s33, %s34
    %p38 = pneg %p32
    %p39 = scmp.eq.s32.totalorder %s9, 1
    %p40 = por %p38, %p39
    %p41 = scmp.ne.s32.totalorder %s33, %s36
    %p42 = scmp.eq.s32.totalorder %s9, 0
    %p43 = por %p41, %p42
    %p44 = scmp.ne.s32.totalorder %s33, %s36
    %p45 = scmp.eq.s32.totalorder %s14, 1
    %p46 = por %p44, %p45
    %p47 = scmp.ne.s32.totalorder %s36, %s37
    %p48 = scmp.eq.s32.totalorder %s14, 0
    %p49 = por %p47, %p48
    %p50 = scmp.ne.s32.totalorder %s36, %s37
    %p51 = scmp.eq.s32.totalorder %s15, 1
    %p52 = por %p50, %p51
    %p54 = scmp.ne.s32.totalorder %s37, %s53
    %p55 = scmp.eq.s32.totalorder %s15, 0
    %p56 = por %p54, %p55
    %s57 = ssub.s32 %s16, %s28
    %p58 = scmp.eq.s32.totalorder %s57, 0
    %s60 = sadd.s32 %s59, 1
    %s61 = scalar_select %p58, %s59, %s60
    %p64 = pneg %p58
    %p65 = scmp.eq.s32.totalorder %s9, 1
    %p66 = por %p64, %p65
    %p67 = scmp.ne.s32.totalorder %s59, %s62
    %p68 = scmp.eq.s32.totalorder %s9, 0
    %p69 = por %p67, %p68
    %p70 = scmp.ne.s32.totalorder %s59, %s62
    %p71 = scmp.eq.s32.totalorder %s14, 1
    %p72 = por %p70, %p71
    %p73 = scmp.ne.s32.totalorder %s62, %s63
    %p74 = scmp.eq.s32.totalorder %s14, 0
    %p75 = por %p73, %p74
    %p76 = scmp.ne.s32.totalorder %s62, %s63
    %p77 = scmp.eq.s32.totalorder %s15, 1
    %p78 = por %p76, %p77
    %p80 = scmp.ne.s32.totalorder %s63, %s79
    %p81 = scmp.eq.s32.totalorder %s15, 0
    %p82 = por %p80, %p81
    %s83 = ssub.s32 %s16, %s28
    %p84 = scmp.eq.s32.totalorder %s83, 0
    %s86 = sadd.s32 %s85, 1
    %s87 = scalar_select %p84, %s85, %s86
    %p90 = pneg %p84
    %p91 = scmp.eq.s32.totalorder %s9, 1
    %p92 = por %p90, %p91
    %p93 = scmp.ne.s32.totalorder %s85, %s88
    %p94 = scmp.eq.s32.totalorder %s9, 0
    %p95 = por %p93, %p94
    %p96 = scmp.ne.s32.totalorder %s85, %s88
    %p97 = scmp.eq.s32.totalorder %s14, 1
    %p98 = por %p96, %p97
    %p99 = scmp.ne.s32.totalorder %s88, %s89
    %p100 = scmp.eq.s32.totalorder %s14, 0
    %p101 = por %p99, %p100
    %p102 = scmp.ne.s32.totalorder %s88, %s89
    %p103 = scmp.eq.s32.totalorder %s15, 1
    %p104 = por %p102, %p103
    %p106 = scmp.ne.s32.totalorder %s89, %s105
    %p107 = scmp.eq.s32.totalorder %s15, 0
    %p108 = por %p106, %p107
    %s109 = ssub.s32 %s16, %s28
    %s110 = ssub.s32 %s17, %s24
    %s111 = sor.u32 %s109, %s110
    %p112 = scmp.eq.s32.totalorder %s111, 0
    %s114 = sadd.s32 %s113, 1
    %s115 = scalar_select %p112, %s113, %s114
    %p118 = pneg %p112
    %p119 = scmp.eq.s32.totalorder %s9, 1
    %p120 = por %p118, %p119
    %p121 = scmp.ne.s32.totalorder %s113, %s116
    %p122 = scmp.eq.s32.totalorder %s9, 0
    %p123 = por %p121, %p122
    %p124 = scmp.ne.s32.totalorder %s113, %s116
    %p125 = scmp.eq.s32.totalorder %s14, 1
    %p126 = por %p124, %p125
    %p127 = scmp.ne.s32.totalorder %s116, %s117
    %p128 = scmp.eq.s32.totalorder %s14, 0
    %p129 = por %p127, %p128
    %p130 = scmp.ne.s32.totalorder %s116, %s117
    %p131 = scmp.eq.s32.totalorder %s15, 1
    %p132 = por %p130, %p131
    %p134 = scmp.ne.s32.totalorder %s117, %s133
    %p135 = scmp.eq.s32.totalorder %s15, 0
    %p136 = por %p134, %p135
    %p137 = scmp.le.s32.totalorder 1, %s9
    %p138 = scmp.lt.s32.totalorder %s9, 3
    %p139 = pnand %p137, %p138
    %p140 = pneg %p139
    // Predicated region
    $region9: #{bert_lm_forward.13} parent=5 // pred_check
      _
    $region10: #{bert_lm_forward.13} parent=5 // pred_check_branch
      %142 = sbr.rel (%p139) target = $region12
    $region11: #{bert_lm_forward.13} parent=5 // pred_region
      %s143 = ssub.s32 %s9, 1
    $region12: #{bert_lm_forward.13} parent=5 // pred_fallthru
      _
    %p144 = scmp.lt.s32.totalorder %s9, 2
    // Predicated region
    $region13: #{bert_lm_forward.13} parent=5 // pred_check
      %p145 = pneg %p144
    $region14: #{bert_lm_forward.13} parent=5 // pred_check_branch
      %147 = sbr.rel (%p145) target = $region16
    $region15: #{bert_lm_forward.13} parent=5 // pred_region
      // Predicated region
      $region17: #{bert_lm_forward.13} parent=15 // pred_check
        %p148 = pneg %p43
      $region18: #{bert_lm_forward.13} parent=15 // pred_check_branch
        %150 = sbr.rel (%p148) target = $region20
      $region19: #{bert_lm_forward.13} parent=15 // pred_region
        %p151 = scmp.lt.s32.totalorder %s16, 1
        %s152 = scalar_select %p151, %s16, 1
        %p153 = scmp.lt.s32.totalorder %s17, 0
        %s154 = scalar_select %p153, %s17, 0
        %s155 = sadd.s32 %s154, %s152
        %s156 = smul.addr %s155, 4
        %s157 = scalar_lea.vmem %s0, %s156
      $region20: #{bert_lm_forward.13} parent=15 // pred_fallthru
        _
      // Predicated region
      $region21: #{bert_lm_forward.13} parent=15 // pred_check
        %p158 = pneg %p69
      $region22: #{bert_lm_forward.13} parent=15 // pred_check_branch
        %160 = sbr.rel (%p158) target = $region24
      $region23: #{bert_lm_forward.13} parent=15 // pred_region
        %p161 = scmp.lt.s32.totalorder %s16, 1
        %s162 = scalar_select %p161, %s16, 1
        %s163 = smul.addr %s162, 4
        %s164 = scalar_lea.vmem %s1, %s163
      $region24: #{bert_lm_forward.13} parent=15 // pred_fallthru
        _
      // Predicated region
      $region25: #{bert_lm_forward.13} parent=15 // pred_check
        %p165 = pneg %p95
      $region26: #{bert_lm_forward.13} parent=15 // pred_check_branch
        %167 = sbr.rel (%p165) target = $region28
      $region27: #{bert_lm_forward.13} parent=15 // pred_region
        %p168 = scmp.lt.s32.totalorder %s16, 1
        %s169 = scalar_select %p168, %s16, 1
        %s170 = scalar_lea.vmem %s2, %s169
      $region28: #{bert_lm_forward.13} parent=15 // pred_fallthru
        _
    $region16: #{bert_lm_forward.13} parent=5 // pred_fallthru
      _
    %p171 = scmp.le.s32.totalorder 1, %s9
    %p172 = scmp.lt.s32.totalorder %s9, 3
    %p173 = pnand %p171, %p172
    %p174 = pneg %p173
    // Predicated region
    $region29: #{bert_lm_forward.13} parent=5 // pred_check
      _
    $region30: #{bert_lm_forward.13} parent=5 // pred_check_branch
      %176 = sbr.rel (%p173) target = $region32
    $region31: #{bert_lm_forward.13} parent=5 // pred_region
      %s177 = ssub.s32 %s9, 1
      %p178 = scmp.lt.s32.totalorder %s18, 1
      %s179 = scalar_select %p178, %s18, 1
      %p180 = scmp.lt.s32.totalorder %s19, 0
      %s181 = scalar_select %p180, %s19, 0
      %s182 = sadd.s32 %s181, %s179
      %s183 = smul.addr %s182, 4
      %s184 = scalar_lea.vmem %s0, %s183
      %p185 = pneg %p49
      %p186 = pneg %p46
      %p187 = scmp.lt.s32.totalorder %s18, 1
      %s188 = scalar_select %p187, %s18, 1
      %s189 = smul.addr %s188, 4
      %s190 = scalar_lea.vmem %s1, %s189
      %p191 = pneg %p75
      %p192 = pneg %p72
      %p193 = scmp.lt.s32.totalorder %s18, 1
      %s194 = scalar_select %p193, %s18, 1
      %s195 = scalar_lea.vmem %s2, %s194
      %p196 = pneg %p101
      %p197 = pneg %p98
      %p198 = pneg %p129
      %p199 = pneg %p126
      %p200 = scmp.lt.s32.totalorder %s18, 1
      %s201 = scalar_select %p200, %s18, 1
      %p202 = scmp.lt.s32.totalorder %s19, 0
      %s203 = scalar_select %p202, %s19, 0
      %s204 = sadd.s32 %s203, %s201
      %s205 = smul.addr %s204, 4
      %s206 = scalar_lea.vmem %s3, %s205
      %p207 = scmp.lt.s32.totalorder %s18, 1
      %s208 = scalar_select %p207, %s18, 1
      %p209 = scmp.lt.s32.totalorder %s19, 0
      %s210 = scalar_select %p209, %s19, 0
      %s211 = sadd.s32 %s210, %s208
      %s212 = smul.addr %s211, 4
      %s213 = scalar_lea.vmem %s0, %s212
      %p214 = scmp.lt.s32.totalorder %s18, 1
      %s215 = scalar_select %p214, %s18, 1
      %s216 = smul.addr %s215, 4
      %s217 = scalar_lea.vmem %s1, %s216
      %p218 = scmp.lt.s32.totalorder %s18, 1
      %s219 = scalar_select %p218, %s18, 1
      %s220 = scalar_lea.vmem %s2, %s219
      %p221 = scmp.lt.s32.totalorder %s18, 1
      %s222 = scalar_select %p221, %s18, 1
      %p223 = scmp.lt.s32.totalorder %s19, 0
      %s224 = scalar_select %p223, %s19, 0
      %s225 = sadd.s32 %s224, %s222
      %s226 = smul.addr %s225, 4
      %s227 = scalar_lea.vmem %s3, %s226
      %v229 = vld [vmem:[%s220] sm:$0x1]
      %v230 = vld [vmem:[%s213] sm:$0xf]
      %v231 = vunpack.c.l.bf16 %v230
      %v232 = vmul.f32 %v231, 0.35351563
      %v233 = vpack.c.bf16 %v232, %v232
      %v234 = vld [vmem:[%s217] sm:$0xf]
      %v236 = vperm.slane %v229, 0
      %v239 = vunpack.c.l.b16 %v234
      %v240 = vpack.c.b16 %v239, %v239
      %241 = vrot.lane.b32.xlu0 %v240, 96
      %v242 = vpop.permute.xlu0 %241
      %vm243 = vcmask 64512
      %v245 = vsel %vm243, %v233, 0
      %v248 = vsel %vm243, %v242, 0
      %250 = vmatpush.bf16.xpose.msra.mxu0 0
      %251 = vmatpush.bf16.xpose.msra.mxu0 0
      %252 = vmatpush.bf16.xpose.msra.mxu0 0
      %253 = vmatpush.bf16.xpose.msra.mxu0 0
      %254 = vmatpush.bf16.xpose.msra.mxu0 0
      %255 = vmatpush.bf16.xpose.msra.mxu0 0
      %256 = vmatpush.bf16.xpose.msra.mxu0 0
      %257 = vmatpush.bf16.xpose.msra.mxu0 %v248
      %258 = vmatmul.bf16.gmra.mxu0 %v245
      %v259 = vpop.f32.mrf.mxu0
      %v260 = vadd.f32 %v236, %v259
      %v261 = vpop.f32.mrf.mxu0
      %262 = vdwg.mxu0
      %v263 = vsel %vm243, %v260, -inf
      %264 = vmax.xlane.f32.xlu0 %v263
      %v265 = vpop.xlane.xlu0 %264
      %v266 = vsub.f32 %v260, %v265
      %v267 = vmul.f32 %v266, 1.442695
      %v268 = vpow.pop %v267
      %v269 = vsel %vm243, %v268, 0.0
      %270 = vadd.xlane.f32.xlu0 %v269
      %v271 = vpop.xlane.xlu0 %270
      %v272 = vrcp.pop %v271
      %v273 = vmul.f32 %v268, %v272
      %v274 = vpack.c.bf16 %v273, %v273
      %275 = vrot.lane.b32.xlu0 %v240, 64
      %v276 = vpop.permute.xlu0 %275
      %v278 = vsel %vm243, %v274, 0
      %vm280 = vcmask 1043456
      %v282 = vsel %vm280, %v276, 0
      %284 = vmatpush.bf16.msra.mxu0 0
      %285 = vmatpush.bf16.msra.mxu0 0
      %286 = vmatpush.bf16.msra.mxu0 0
      %287 = vmatpush.bf16.msra.mxu0 0
      %288 = vmatpush.bf16.msra.mxu0 0
      %289 = vmatpush.bf16.msra.mxu0 0
      %290 = vmatpush.bf16.msra.mxu0 0
      %291 = vmatpush.bf16.msra.mxu0 %v282
      %292 = vmatmul.bf16.gmra.mxu0 %v278
      %v293 = vpop.f32.mrf.mxu0
      %v294 = vadd.f32 0.0, %v293
      %v295 = vpop.f32.mrf.mxu0
      %296 = vdwg.mxu0
      %298 = vrot.lane.b32.xlu0 %v233, 120
      %v299 = vpop.permute.xlu0 %298
      %300 = vrot.lane.b32.xlu0 %v240, 88
      %v301 = vpop.permute.xlu0 %300
      %v303 = vsel %vm243, %v299, 0
      %v306 = vsel %vm243, %v301, 0
      %308 = vmatpush.bf16.xpose.msra.mxu0 0
      %309 = vmatpush.bf16.xpose.msra.mxu0 0
      %310 = vmatpush.bf16.xpose.msra.mxu0 0
      %311 = vmatpush.bf16.xpose.msra.mxu0 0
      %312 = vmatpush.bf16.xpose.msra.mxu0 0
      %313 = vmatpush.bf16.xpose.msra.mxu0 0
      %314 = vmatpush.bf16.xpose.msra.mxu0 0
      %315 = vmatpush.bf16.xpose.msra.mxu0 %v306
      %316 = vmatmul.bf16.gmra.mxu0 %v303
      %v317 = vpop.f32.mrf.mxu0
      %v318 = vadd.f32 %v236, %v317
      %v319 = vpop.f32.mrf.mxu0
      %320 = vdwg.mxu0
      %v321 = vsel %vm243, %v318, -inf
      %322 = vmax.xlane.f32.xlu0 %v321
      %v323 = vpop.xlane.xlu0 %322
      %v324 = vsub.f32 %v318, %v323
      %v325 = vmul.f32 %v324, 1.442695
      %v326 = vpow.pop %v325
      %v327 = vsel %vm243, %v326, 0.0
      %328 = vadd.xlane.f32.xlu0 %v327
      %v329 = vpop.xlane.xlu0 %328
      %v330 = vrcp.pop %v329
      %v331 = vmul.f32 %v326, %v330
      %v332 = vpack.c.bf16 %v331, %v331
      %333 = vrot.lane.b32.xlu0 %v240, 56
      %v334 = vpop.permute.xlu0 %333
      %v336 = vsel %vm243, %v332, 0
      %v339 = vsel %vm280, %v334, 0
      %341 = vmatpush.bf16.msra.mxu0 0
      %342 = vmatpush.bf16.msra.mxu0 0
      %343 = vmatpush.bf16.msra.mxu0 0
      %344 = vmatpush.bf16.msra.mxu0 0
      %345 = vmatpush.bf16.msra.mxu0 0
      %346 = vmatpush.bf16.msra.mxu0 0
      %347 = vmatpush.bf16.msra.mxu0 0
      %348 = vmatpush.bf16.msra.mxu0 %v339
      %349 = vmatmul.bf16.gmra.mxu0 %v336
      %v350 = vpop.f32.mrf.mxu0
      %v351 = vadd.f32 0.0, %v350
      %v352 = vpop.f32.mrf.mxu0
      %353 = vdwg.mxu0
      %354 = vrot.lane.b32.xlu0 %v233, 112
      %v355 = vpop.permute.xlu0 %354
      %356 = vrot.lane.b32.xlu0 %v240, 80
      %v357 = vpop.permute.xlu0 %356
      %v359 = vsel %vm243, %v355, 0
      %v362 = vsel %vm243, %v357, 0
      %364 = vmatpush.bf16.xpose.msra.mxu0 0
      %365 = vmatpush.bf16.xpose.msra.mxu0 0
      %366 = vmatpush.bf16.xpose.msra.mxu0 0
      %367 = vmatpush.bf16.xpose.msra.mxu0 0
      %368 = vmatpush.bf16.xpose.msra.mxu0 0
      %369 = vmatpush.bf16.xpose.msra.mxu0 0
      %370 = vmatpush.bf16.xpose.msra.mxu0 0
      %371 = vmatpush.bf16.xpose.msra.mxu0 %v362
      %372 = vmatmul.bf16.gmra.mxu0 %v359
      %v373 = vpop.f32.mrf.mxu0
      %v374 = vadd.f32 %v236, %v373
      %v375 = vpop.f32.mrf.mxu0
      %376 = vdwg.mxu0
      %v377 = vsel %vm243, %v374, -inf
      %378 = vmax.xlane.f32.xlu0 %v377
      %v379 = vpop.xlane.xlu0 %378
      %v380 = vsub.f32 %v374, %v379
      %v381 = vmul.f32 %v380, 1.442695
      %v382 = vpow.pop %v381
      %v383 = vsel %vm243, %v382, 0.0
      %384 = vadd.xlane.f32.xlu0 %v383
      %v385 = vpop.xlane.xlu0 %384
      %v386 = vrcp.pop %v385
      %v387 = vmul.f32 %v382, %v386
      %v388 = vpack.c.bf16 %v387, %v387
      %389 = vrot.lane.b32.xlu0 %v240, 48
      %v390 = vpop.permute.xlu0 %389
      %v392 = vsel %vm243, %v388, 0
      %v395 = vsel %vm280, %v390, 0
      %397 = vmatpush.bf16.msra.mxu0 0
      %398 = vmatpush.bf16.msra.mxu0 0
      %399 = vmatpush.bf16.msra.mxu0 0
      %400 = vmatpush.bf16.msra.mxu0 0
      %401 = vmatpush.bf16.msra.mxu0 0
      %402 = vmatpush.bf16.msra.mxu0 0
      %403 = vmatpush.bf16.msra.mxu0 0
      %404 = vmatpush.bf16.msra.mxu0 %v395
      %405 = vmatmul.bf16.gmra.mxu0 %v392
      %v406 = vpop.f32.mrf.mxu0
      %v407 = vadd.f32 0.0, %v406
      %v408 = vpop.f32.mrf.mxu0
      %409 = vdwg.mxu0
      %410 = vrot.lane.b32.xlu0 %v233, 104
      %v411 = vpop.permute.xlu0 %410
      %412 = vrot.lane.b32.xlu0 %v240, 72
      %v413 = vpop.permute.xlu0 %412
      %v415 = vsel %vm243, %v411, 0
      %v418 = vsel %vm243, %v413, 0
      %420 = vmatpush.bf16.xpose.msra.mxu0 0
      %421 = vmatpush.bf16.xpose.msra.mxu0 0
      %422 = vmatpush.bf16.xpose.msra.mxu0 0
      %423 = vmatpush.bf16.xpose.msra.mxu0 0
      %424 = vmatpush.bf16.xpose.msra.mxu0 0
      %425 = vmatpush.bf16.xpose.msra.mxu0 0
      %426 = vmatpush.bf16.xpose.msra.mxu0 0
      %427 = vmatpush.bf16.xpose.msra.mxu0 %v418
      %428 = vmatmul.bf16.gmra.mxu0 %v415
      %v429 = vpop.f32.mrf.mxu0
      %v430 = vadd.f32 %v236, %v429
      %v431 = vpop.f32.mrf.mxu0
      %432 = vdwg.mxu0
      %v433 = vsel %vm243, %v430, -inf
      %434 = vmax.xlane.f32.xlu0 %v433
      %v435 = vpop.xlane.xlu0 %434
      %v436 = vsub.f32 %v430, %v435
      %v437 = vmul.f32 %v436, 1.442695
      %v438 = vpow.pop %v437
      %v439 = vsel %vm243, %v438, 0.0
      %440 = vadd.xlane.f32.xlu0 %v439
      %v441 = vpop.xlane.xlu0 %440
      %v442 = vrcp.pop %v441
      %v443 = vmul.f32 %v438, %v442
      %v444 = vpack.c.bf16 %v443, %v443
      %445 = vrot.lane.b32.xlu0 %v240, 40
      %v446 = vpop.permute.xlu0 %445
      %v448 = vsel %vm243, %v444, 0
      %v451 = vsel %vm280, %v446, 0
      %453 = vmatpush.bf16.msra.mxu0 0
      %454 = vmatpush.bf16.msra.mxu0 0
      %455 = vmatpush.bf16.msra.mxu0 0
      %456 = vmatpush.bf16.msra.mxu0 0
      %457 = vmatpush.bf16.msra.mxu0 0
      %458 = vmatpush.bf16.msra.mxu0 0
      %459 = vmatpush.bf16.msra.mxu0 0
      %460 = vmatpush.bf16.msra.mxu0 %v451
      %461 = vmatmul.bf16.gmra.mxu0 %v448
      %v462 = vpop.f32.mrf.mxu0
      %v463 = vadd.f32 0.0, %v462
      %v464 = vpop.f32.mrf.mxu0
      %465 = vdwg.mxu0
      %467 = vrot.lane.b32.xlu0 %v351, 8
      %v468 = vpop.permute.xlu0 %467
      %471 = vrot.lane.b32.xlu0 %v407, 16
      %v472 = vpop.permute.xlu0 %471
      %475 = vrot.lane.b32.xlu0 %v463, 24
      %v476 = vpop.permute.xlu0 %475
      %v478 = vsel %vm243, %v294, %v468
      %vm479 = vcmask 130048
      %v480 = vsel %vm479, %v478, %v472
      %vm481 = vcmask 195584
      %v482 = vsel %vm481, %v480, %v476
      %v483 = vpack.c.bf16 %v482, %v482
      %vm484 = vcmask 257024
      %485 = vst.msk [vmem:[%s227] sm:$0xf] %vm484, %v483
      %p486 = scmp.lt.s32.totalorder %s18, 1
      %s487 = scalar_select %p486, %s18, 1
      %p488 = scmp.lt.s32.totalorder %s19, 0
      %s489 = scalar_select %p488, %s19, 0
      %s490 = sadd.s32 %s489, %s487
      %s491 = smul.addr %s490, 4
      %s492 = scalar_lea.vmem %s3, %s491
      // Predicated region
      $region33: #{bert_lm_forward.13} parent=31 // pred_check
        %p493 = pneg %p126
      $region34: #{bert_lm_forward.13} parent=31 // pred_check_branch
        %495 = sbr.rel (%p493) target = $region36
      $region35: #{bert_lm_forward.13} parent=31 // pred_region
        _
      $region36: #{bert_lm_forward.13} parent=31 // pred_fallthru
        _
    $region32: #{bert_lm_forward.13} parent=5 // pred_fallthru
      _
    %p496 = scmp.le.s32.totalorder 2, %s9
    // Predicated region
    $region37: #{bert_lm_forward.13} parent=5 // pred_check
      %p497 = pneg %p496
    $region38: #{bert_lm_forward.13} parent=5 // pred_check_branch
      %499 = sbr.rel (%p497) target = $region40
    $region39: #{bert_lm_forward.13} parent=5 // pred_region
      %s500 = ssub.s32 %s9, 2
      // Predicated region
      $region41: #{bert_lm_forward.13} parent=39 // pred_check
        %p501 = pneg %p132
      $region42: #{bert_lm_forward.13} parent=39 // pred_check_branch
        %503 = sbr.rel (%p501) target = $region44
      $region43: #{bert_lm_forward.13} parent=39 // pred_region
        %p504 = scmp.lt.s32.totalorder %s20, 1
        %s505 = scalar_select %p504, %s20, 1
        %p506 = scmp.lt.s32.totalorder %s21, 0
        %s507 = scalar_select %p506, %s21, 0
        %s508 = sadd.s32 %s507, %s505
        %s509 = smul.addr %s508, 4
        %s510 = scalar_lea.vmem %s3, %s509
      $region44: #{bert_lm_forward.13} parent=39 // pred_fallthru
        _
    $region40: #{bert_lm_forward.13} parent=5 // pred_fallthru
      _
  $region6: #{bert_lm_forward.13} parent=0 // loop_footer
    %s13 = sadd.s32 1, %s9
  $region7: #{bert_lm_forward.13} parent=0 // loop_footer_branch
    %8 = sbr.rel target = $region3
  $region8: #{bert_lm_forward.13} parent=0 // loop_exit
    _

// kernel: bert_lm_forward.23
$region0: #{bert_lm_forward.23}
  #allocation0 [shape = 'u32[]', space=smem, size = 0x4, offset = 0x4, fixed_abs, tag = 'smem constant byte address 0x4 - core index']
  #allocation1 [shape = 'u32[72,128]{1,0:T(1,128)}', space=vmem, size = 0x9000, scoped, tag = 'internal scratch']
  %s0 = inlined_call_operand.vmem [shape: bf16[16,128], index: 0, kind: input, shape index: {}]
  %s1 = inlined_call_operand.vmem [shape: f32[16,1], index: 1, kind: input, shape index: {}]
  %s2 = inlined_call_operand.vmem [shape: bf16[16,128], index: 2, kind: output, shape index: {}]
  %s3 = sld [smem:[#allocation0]]
  $region18: #{bert_lm_forward.23} parent=0
    _
  %s5 = ssub.s32 1, %s3
  %s6 = scalar_select 0, %s5, %s3
  // Predicated region
  $region2: #{bert_lm_forward.23} parent=0 // pred_check
    _
  $region3: #{bert_lm_forward.23} parent=0 // pred_check_branch
    %8 = sbr.rel (0) target = $region5
  $region4: #{bert_lm_forward.23} parent=0 // pred_region
    _
  $region5: #{bert_lm_forward.23} parent=0 // pred_fallthru
    _
  // Predicated region
  $region6: #{bert_lm_forward.23} parent=0 // pred_check
    _
  $region7: #{bert_lm_forward.23} parent=0 // pred_check_branch
    %10 = sbr.rel (0) target = $region9
  $region8: #{bert_lm_forward.23} parent=0 // pred_region
    _
  $region9: #{bert_lm_forward.23} parent=0 // pred_fallthru
    _
  %v11 = vld [vmem:[%s0] sm:$0xf]
  %v12 = vld [vmem:[%s0 + $0x4] sm:$0xf]
  %v13 = vunpack.c.l.bf16 %v11
  %v14 = vunpack.c.l.bf16 %v12
  %v15 = vld [vmem:[%s1] sm:$0xff]
  %v16 = vld [vmem:[%s1 + $0x8] sm:$0xff]
  %18 = vset.pattern.permute.xlu0 0
  %19 = vperm.xlu0 %18, %v15
  %v20 = vpop.permute.xlu0 %19
  %23 = vset.pattern.permute.xlu0 0
  %24 = vperm.xlu0 %23, %v16
  %v25 = vpop.permute.xlu0 %24
  %v27 = vsub.f32 %v13, %v20
  %v28 = vsub.f32 %v14, %v25
  %v29 = vpack.c.bf16 %v27, %v27
  %v30 = vpack.c.bf16 %v28, %v28
  %31 = vst [vmem:[%s2] sm:$0xf] %v29
  %32 = vst [vmem:[%s2 + $0x4] sm:$0xf] %v30
  // Predicated region
  $region10: #{bert_lm_forward.23} parent=0 // pred_check
    _
  $region11: #{bert_lm_forward.23} parent=0 // pred_check_branch
    %34 = sbr.rel (0) target = $region13
  $region12: #{bert_lm_forward.23} parent=0 // pred_region
    _
  $region13: #{bert_lm_forward.23} parent=0 // pred_fallthru
    _
  // Predicated region
  $region14: #{bert_lm_forward.23} parent=0 // pred_check
    _
  $region15: #{bert_lm_forward.23} parent=0 // pred_check_branch
    %36 = sbr.rel (0) target = $region17
  $region16: #{bert_lm_forward.23} parent=0 // pred_region
    _
  $region17: #{bert_lm_forward.23} parent=0 // pred_fallthru
    _

// kernel: bert_lm_forward.16
$region0: #{bert_lm_forward.16}
  #allocation0 [shape = 'u32[]', space=smem, size = 0x4, offset = 0x4, fixed_abs, tag = 'smem constant byte address 0x4 - core index']
  #allocation1 [shape = 'u32[72,128]{1,0:T(1,128)}', space=vmem, size = 0x9000, scoped, tag = 'internal scratch']
  #allocation2 [shape = 'f32[16,32]{1,0:T(8,128)}', space=vmem, size = 0x2000, scoped, tag = 'scratch operand']
  %s0 = inlined_call_operand.vmem [shape: bf16[16,128], index: 0, kind: input, shape index: {}]
  %s1 = inlined_call_operand.vmem [shape: bf16[128,32], index: 1, kind: input, shape index: {}]
  %s2 = inlined_call_operand.vmem [shape: f32[1,32], index: 2, kind: input, shape index: {}]
  %s3 = inlined_call_operand.vmem [shape: bf16[16,32], index: 3, kind: input, shape index: {}]
  %s4 = inlined_call_operand.vmem [shape: f32[1,32], index: 4, kind: input, shape index: {}]
  %s5 = inlined_call_operand.vmem [shape: f32[1,32], index: 5, kind: input, shape index: {}]
  %s6 = inlined_call_operand.vmem [shape: bf16[16,32], index: 6, kind: output, shape index: {}]
  %s7 = sld [smem:[#allocation0]]
  $region42: #{bert_lm_forward.16} parent=0
    _
  %s9 = ssub.s32 1, %s7
  %s10 = scalar_select 0, %s9, %s7
  // Predicated region
  $region2: #{bert_lm_forward.16} parent=0 // pred_check
    _
  $region3: #{bert_lm_forward.16} parent=0 // pred_check_branch
    %12 = sbr.rel (0) target = $region5
  $region4: #{bert_lm_forward.16} parent=0 // pred_region
    _
  $region5: #{bert_lm_forward.16} parent=0 // pred_fallthru
    _
  // Predicated region
  $region6: #{bert_lm_forward.16} parent=0 // pred_check
    _
  $region7: #{bert_lm_forward.16} parent=0 // pred_check_branch
    %14 = sbr.rel (0) target = $region9
  $region8: #{bert_lm_forward.16} parent=0 // pred_region
    _
  $region9: #{bert_lm_forward.16} parent=0 // pred_fallthru
    _
  // Predicated region
  $region10: #{bert_lm_forward.16} parent=0 // pred_check
    _
  $region11: #{bert_lm_forward.16} parent=0 // pred_check_branch
    %16 = sbr.rel (0) target = $region13
  $region12: #{bert_lm_forward.16} parent=0 // pred_region
    _
  $region13: #{bert_lm_forward.16} parent=0 // pred_fallthru
    _
  // Predicated region
  $region14: #{bert_lm_forward.16} parent=0 // pred_check
    _
  $region15: #{bert_lm_forward.16} parent=0 // pred_check_branch
    %18 = sbr.rel (0) target = $region17
  $region16: #{bert_lm_forward.16} parent=0 // pred_region
    _
  $region17: #{bert_lm_forward.16} parent=0 // pred_fallthru
    _
  // Predicated region
  $region18: #{bert_lm_forward.16} parent=0 // pred_check
    _
  $region19: #{bert_lm_forward.16} parent=0 // pred_check_branch
    %20 = sbr.rel (0) target = $region21
  $region20: #{bert_lm_forward.16} parent=0 // pred_region
    _
  $region21: #{bert_lm_forward.16} parent=0 // pred_fallthru
    _
  // Predicated region
  $region22: #{bert_lm_forward.16} parent=0 // pred_check
    _
  $region23: #{bert_lm_forward.16} parent=0 // pred_check_branch
    %22 = sbr.rel (0) target = $region25
  $region24: #{bert_lm_forward.16} parent=0 // pred_region
    _
  $region25: #{bert_lm_forward.16} parent=0 // pred_fallthru
    _
  %p23 = scmp.eq.s32.totalorder 0, 0
  // Predicated region
  $region26: #{bert_lm_forward.16} parent=0 // pred_check
    %p24 = pneg %p23
  $region27: #{bert_lm_forward.16} parent=0 // pred_check_branch
    %26 = sbr.rel (%p24) target = $region29
  $region28: #{bert_lm_forward.16} parent=0 // pred_region
    %vm27 = vcmask 261120
    %28 = vst.msk [vmem:[#allocation2] sm:$0xff] %vm27, 0.0
    %29 = vst.msk [vmem:[#allocation2 + $0x8] sm:$0xff] %vm27, 0.0
  $region29: #{bert_lm_forward.16} parent=0 // pred_fallthru
    _
  %v30 = vld [vmem:[#allocation2] sm:$0xff]
  %v31 = vld [vmem:[#allocation2 + $0x8] sm:$0xff]
  %v32 = vld [vmem:[%s0] sm:$0xf]
  %v33 = vld [vmem:[%s0 + $0x4] sm:$0xf]
  %v34 = vld [vmem:[%s1] sm:$0xf]
  %v35 = vld [vmem:[%s1 + $0x4] sm:$0xf]
  %v36 = vld [vmem:[%s1 + $0x8] sm:$0xf]
  %v37 = vld [vmem:[%s1 + $0xc] sm:$0xf]
  %v38 = vld [vmem:[%s1 + $0x10] sm:$0xf]
  %v39 = vld [vmem:[%s1 + $0x14] sm:$0xf]
  %v40 = vld [vmem:[%s1 + $0x18] sm:$0xf]
  %v41 = vld [vmem:[%s1 + $0x1c] sm:$0xf]
  %v42 = vld [vmem:[%s1 + $0x20] sm:$0xf]
  %v43 = vld [vmem:[%s1 + $0x24] sm:$0xf]
  %v44 = vld [vmem:[%s1 + $0x28] sm:$0xf]
  %v45 = vld [vmem:[%s1 + $0x2c] sm:$0xf]
  %v46 = vld [vmem:[%s1 + $0x30] sm:$0xf]
  %v47 = vld [vmem:[%s1 + $0x34] sm:$0xf]
  %v48 = vld [vmem:[%s1 + $0x38] sm:$0xf]
  %v49 = vld [vmem:[%s1 + $0x3c] sm:$0xf]
  %v52 = vunpack.c.l.b16 %v32
  %v53 = vunpack.c.l.b16 %v33
  %v54 = vpack.c.b16 %v53, %v52
  %v72 = vunpack.c.l.b16 %v34
  %v73 = vunpack.c.l.b16 %v35
  %v74 = vunpack.c.l.b16 %v36
  %v75 = vunpack.c.l.b16 %v37
  %v76 = vunpack.c.l.b16 %v38
  %v77 = vunpack.c.l.b16 %v39
  %v78 = vunpack.c.l.b16 %v40
  %v79 = vunpack.c.l.b16 %v41
  %v80 = vunpack.c.l.b16 %v42
  %v81 = vunpack.c.l.b16 %v43
  %v82 = vunpack.c.l.b16 %v44
  %v83 = vunpack.c.l.b16 %v45
  %v84 = vunpack.c.l.b16 %v46
  %v85 = vunpack.c.l.b16 %v47
  %v86 = vunpack.c.l.b16 %v48
  %v87 = vunpack.c.l.b16 %v49
  %v88 = vpack.c.b16 %v73, %v72
  %v89 = vpack.c.b16 %v75, %v74
  %v90 = vpack.c.b16 %v77, %v76
  %v91 = vpack.c.b16 %v79, %v78
  %v92 = vpack.c.b16 %v81, %v80
  %v93 = vpack.c.b16 %v83, %v82
  %v94 = vpack.c.b16 %v85, %v84
  %v95 = vpack.c.b16 %v87, %v86
  %104 = vmatpush.bf16.msra.mxu0 %v95
  %105 = vmatpush.bf16.msra.mxu0 %v94
  %106 = vmatpush.bf16.msra.mxu0 %v93
  %107 = vmatpush.bf16.msra.mxu0 %v92
  %108 = vmatpush.bf16.msra.mxu0 %v91
  %109 = vmatpush.bf16.msra.mxu0 %v90
  %110 = vmatpush.bf16.msra.mxu0 %v89
  %111 = vmatpush.bf16.msra.mxu0 %v88
  %112 = vmatmul.bf16.gmra.mxu0 %v54
  %v113 = vpop.f32.mrf.mxu0
  %v114 = vadd.f32 0.0, %v113
  %v115 = vpop.f32.mrf.mxu0
  %v116 = vadd.f32 0.0, %v115
  %117 = vdwg.mxu0
  %v118 = vadd.f32 %v30, %v114
  %v119 = vadd.f32 %v31, %v116
  %vm120 = vcmask 261120
  %121 = vst.msk [vmem:[#allocation2] sm:$0xff] %vm120, %v118
  %122 = vst.msk [vmem:[#allocation2 + $0x8] sm:$0xff] %vm120, %v119
  // Predicated region
  $region30: #{bert_lm_forward.16} parent=0 // pred_check
    %p123 = pneg %p23
  $region31: #{bert_lm_forward.16} parent=0 // pred_check_branch
    %125 = sbr.rel (%p123) target = $region33
  $region32: #{bert_lm_forward.16} parent=0 // pred_region
    %v126 = vld [vmem:[#allocation2] sm:$0xff]
    %v127 = vld [vmem:[#allocation2 + $0x8] sm:$0xff]
    %v128 = vld [vmem:[%s2] sm:$0x1]
    %v130 = vperm.slane %v128, 0
    %v132 = vadd.f32 %v126, %v130
    %v133 = vadd.f32 %v127, %v130
    %v134 = vld [vmem:[%s3] sm:$0xf]
    %v135 = vld [vmem:[%s3 + $0x4] sm:$0xf]
    %v136 = vunpack.c.l.bf16 %v134
    %v137 = vunpack.c.l.bf16 %v135
    %v138 = vadd.f32 %v132, %v136
    %v139 = vadd.f32 %v133, %v137
    %v140 = vsel %vm120, %v138, 0.0
    %141 = vadd.xlane.f32.xlu0 %v140
    %v142 = vpop.xlane.xlu0 %141
    %v143 = vsel %vm120, %v139, 0.0
    %144 = vadd.xlane.f32.xlu0 %v143
    %v145 = vpop.xlane.xlu0 %144
    %v146 = vrcp.pop 32.0
    %v147 = vmul.f32 32.0, %v146
    %v148 = vsub.f32 1.0, %v147
    %v149 = vmul.f32 %v146, %v148
    %v150 = vadd.f32 %v146, %v149
    %vm151 = vweird.f32 %v146
    %v152 = vsel %vm151, %v146, %v150
    %v153 = vmul.f32 %v142, %v152
    %v154 = vmul.f32 %v145, %v152
    %v155 = vsub.f32 %v138, %v153
    %v156 = vsub.f32 %v139, %v154
    %v157 = vmul.f32 %v155, %v155
    %v158 = vmul.f32 %v156, %v156
    %v159 = vsel %vm120, %v157, 0.0
    %160 = vadd.xlane.f32.xlu0 %v159
    %v161 = vpop.xlane.xlu0 %160
    %v162 = vsel %vm120, %v158, 0.0
    %163 = vadd.xlane.f32.xlu0 %v162
    %v164 = vpop.xlane.xlu0 %163
    %v165 = vmul.f32 %v161, %v152
    %v166 = vmul.f32 %v164, %v152
    %v167 = vadd.f32 %v165, 1e-05
    %v168 = vadd.f32 %v166, 1e-05
    %v169 = vrsqrt.pop %v167
    %v170 = vmul.f32 %v169, %v167
    %v171 = vmul.f32 %v170, %v169
    %v172 = vmul.f32 0.5, %v171
    %v173 = vsub.f32 1.5, %v172
    %v174 = vmul.f32 %v169, %v173
    %vm175 = vweird.f32 %v167
    %vm176 = vweird.f32 %v169
    %vm177 = vmor %vm175, %vm176
    %v178 = vsel %vm177, %v169, %v174
    %v179 = vrsqrt.pop %v168
    %v180 = vmul.f32 %v179, %v168
    %v181 = vmul.f32 %v180, %v179
    %v182 = vmul.f32 0.5, %v181
    %v183 = vsub.f32 1.5, %v182
    %v184 = vmul.f32 %v179, %v183
    %vm185 = vweird.f32 %v168
    %vm186 = vweird.f32 %v179
    %vm187 = vmor %vm185, %vm186
    %v188 = vsel %vm187, %v179, %v184
    %v189 = vmul.f32 %v155, %v178
    %v190 = vmul.f32 %v156, %v188
    %v191 = vld [vmem:[%s4] sm:$0x1]
    %v193 = vperm.slane %v191, 0
    %v195 = vmul.f32 %v189, %v193
    %v196 = vmul.f32 %v190, %v193
    %v197 = vld [vmem:[%s5] sm:$0x1]
    %v199 = vperm.slane %v197, 0
    %v201 = vadd.f32 %v195, %v199
    %v202 = vadd.f32 %v196, %v199
    %v203 = vpack.c.bf16 %v201, %v201
    %v204 = vpack.c.bf16 %v202, %v202
    %vm205 = vcmask 257024
    %206 = vst.msk [vmem:[%s6] sm:$0xf] %vm205, %v203
    %207 = vst.msk [vmem:[%s6 + $0x4] sm:$0xf] %vm205, %v204
  $region33: #{bert_lm_forward.16} parent=0 // pred_fallthru
    _
  // Predicated region
  $region34: #{bert_lm_forward.16} parent=0 // pred_check
    _
  $region35: #{bert_lm_forward.16} parent=0 // pred_check_branch
    %209 = sbr.rel (0) target = $region37
  $region36: #{bert_lm_forward.16} parent=0 // pred_region
    _
  $region37: #{bert_lm_forward.16} parent=0 // pred_fallthru
    _
  // Predicated region
  $region38: #{bert_lm_forward.16} parent=0 // pred_check
    _
  $region39: #{bert_lm_forward.16} parent=0 // pred_check_branch
    %211 = sbr.rel (0) target = $region41
  $region40: #{bert_lm_forward.16} parent=0 // pred_region
    _
  $region41: #{bert_lm_forward.16} parent=0 // pred_fallthru
    _

// kernel: bert_lm_forward.22
$region0: #{bert_lm_forward.22}
  #allocation0 [shape = 'u32[]', space=smem, size = 0x4, offset = 0x4, fixed_abs, tag = 'smem constant byte address 0x4 - core index']
  #allocation1 [shape = 'u32[72,128]{1,0:T(1,128)}', space=vmem, size = 0x9000, scoped, tag = 'internal scratch']
  #allocation2 [shape = 'f32[16,1]{1,0:T(8,128)}', space=vmem, size = 0x2000, scoped, tag = 'scratch operand']
  #allocation3 [shape = 'f32[16,1]{1,0:T(8,128)}', space=vmem, size = 0x2000, scoped, tag = 'scratch operand']
  %s0 = inlined_call_operand.vmem [shape: bf16[16,32], index: 0, kind: input, shape index: {}]
  %s1 = inlined_call_operand.vmem [shape: bf16[32,128], index: 1, kind: input, shape index: {}]
  %s2 = inlined_call_operand.vmem [shape: f32[1,128], index: 2, kind: input, shape index: {}]
  %s3 = inlined_call_operand.vmem [shape: bf16[16,128], index: 3, kind: output, shape index: {0}]
  %s4 = inlined_call_operand.vmem [shape: f32[16,1], index: 4, kind: output, shape index: {1}]
  %5 = xla_tuple %s3, %s4
  %s6 = sld [smem:[#allocation0]]
  $region38: #{bert_lm_forward.22} parent=0
    _
  %s8 = ssub.s32 1, %s6
  %s9 = scalar_select 0, %s8, %s6
  // Predicated region
  $region2: #{bert_lm_forward.22} parent=0 // pred_check
    _
  $region3: #{bert_lm_forward.22} parent=0 // pred_check_branch
    %11 = sbr.rel (0) target = $region5
  $region4: #{bert_lm_forward.22} parent=0 // pred_region
    _
  $region5: #{bert_lm_forward.22} parent=0 // pred_fallthru
    _
  // Predicated region
  $region6: #{bert_lm_forward.22} parent=0 // pred_check
    _
  $region7: #{bert_lm_forward.22} parent=0 // pred_check_branch
    %13 = sbr.rel (0) target = $region9
  $region8: #{bert_lm_forward.22} parent=0 // pred_region
    _
  $region9: #{bert_lm_forward.22} parent=0 // pred_fallthru
    _
  // Predicated region
  $region10: #{bert_lm_forward.22} parent=0 // pred_check
    _
  $region11: #{bert_lm_forward.22} parent=0 // pred_check_branch
    %15 = sbr.rel (0) target = $region13
  $region12: #{bert_lm_forward.22} parent=0 // pred_region
    _
  $region13: #{bert_lm_forward.22} parent=0 // pred_fallthru
    _
  %p17 = scmp.eq.s32.totalorder 0, 0
  // Predicated region
  $region14: #{bert_lm_forward.22} parent=0 // pred_check
    %p18 = pneg %p17
  $region15: #{bert_lm_forward.22} parent=0 // pred_check_branch
    %20 = sbr.rel (%p18) target = $region17
  $region16: #{bert_lm_forward.22} parent=0 // pred_region
    %vm21 = vcmask 7168
    %22 = vst.msk [vmem:[#allocation2] sm:$0xff] %vm21, -inf
    %23 = vst.msk [vmem:[#allocation2 + $0x8] sm:$0xff] %vm21, -inf
    %24 = vst.msk [vmem:[#allocation3] sm:$0xff] %vm21, 0.0
    %25 = vst.msk [vmem:[#allocation3 + $0x8] sm:$0xff] %vm21, 0.0
  $region17: #{bert_lm_forward.22} parent=0 // pred_fallthru
    _
  %v26 = vld [vmem:[%s0] sm:$0xf]
  %v27 = vld [vmem:[%s0 + $0x4] sm:$0xf]
  %v28 = vld [vmem:[%s1] sm:$0xf]
  %v29 = vld [vmem:[%s1 + $0x4] sm:$0xf]
  %v30 = vld [vmem:[%s1 + $0x8] sm:$0xf]
  %v31 = vld [vmem:[%s1 + $0xc] sm:$0xf]
  %v32 = vld [vmem:[%s2] sm:$0x1]
  %v34 = vperm.slane %v32, 0
  %v38 = vunpack.c.l.b16 %v26
  %v39 = vunpack.c.l.b16 %v27
  %v40 = vpack.c.b16 %v39, %v38
  %v45 = vunpack.c.l.b16 %v28
  %v46 = vunpack.c.l.b16 %v29
  %v47 = vunpack.c.l.b16 %v30
  %v48 = vunpack.c.l.b16 %v31
  %v49 = vpack.c.b16 %v46, %v45
  %v50 = vpack.c.b16 %v48, %v47
  %vm53 = vcmask 261120
  %v55 = vsel %vm53, %v40, 0
  %57 = vmatpush.bf16.msra.mxu0 0
  %58 = vmatpush.bf16.msra.mxu0 0
  %59 = vmatpush.bf16.msra.mxu0 0
  %60 = vmatpush.bf16.msra.mxu0 0
  %61 = vmatpush.bf16.msra.mxu0 0
  %62 = vmatpush.bf16.msra.mxu0 0
  %63 = vmatpush.bf16.msra.mxu0 %v50
  %64 = vmatpush.bf16.msra.mxu0 %v49
  %65 = vmatmul.bf16.gmra.mxu0 %v55
  %v66 = vpop.f32.mrf.mxu0
  %v67 = vadd.f32 %v34, %v66
  %v68 = vpop.f32.mrf.mxu0
  %v69 = vadd.f32 %v34, %v68
  %70 = vdwg.mxu0
  %v71 = vpack.c.bf16 %v67, %v67
  %v72 = vpack.c.bf16 %v69, %v69
  %73 = vst [vmem:[%s3] sm:$0xf] %v71
  %74 = vst [vmem:[%s3 + $0x4] sm:$0xf] %v72
  %v75 = vld [vmem:[#allocation2] sm:$0xff]
  %v76 = vld [vmem:[#allocation2 + $0x8] sm:$0xff]
  %77 = vmax.xlane.f32.xlu0 %v67
  %v78 = vpop.xlane.xlu0 %77
  %79 = vmax.xlane.f32.xlu0 %v69
  %v80 = vpop.xlane.xlu0 %79
  %v81 = vmax.f32 %v75, %v78
  %v82 = vmax.f32 %v76, %v80
  %v83 = vld [vmem:[#allocation3] sm:$0xff]
  %v84 = vld [vmem:[#allocation3 + $0x8] sm:$0xff]
  %v85 = vsub.f32 %v75, %v81
  %v86 = vsub.f32 %v76, %v82
  %v87 = vmul.f32 %v85, 1.442695
  %v88 = vpow.pop %v87
  %v89 = vmul.f32 %v86, 1.442695
  %v90 = vpow.pop %v89
  %v91 = vmul.f32 %v83, %v88
  %v92 = vmul.f32 %v84, %v90
  %94 = vset.pattern.permute.xlu0 0
  %95 = vperm.xlu0 %94, %v81
  %v96 = vpop.permute.xlu0 %95
  %99 = vset.pattern.permute.xlu0 0
  %100 = vperm.xlu0 %99, %v82
  %v101 = vpop.permute.xlu0 %100
  %v103 = vsub.f32 %v67, %v96
  %v104 = vsub.f32 %v69, %v101
  %v105 = vmul.f32 %v103, 1.442695
  %v106 = vpow.pop %v105
  %v107 = vmul.f32 %v104, 1.442695
  %v108 = vpow.pop %v107
  %109 = vadd.xlane.f32.xlu0 %v106
  %v110 = vpop.xlane.xlu0 %109
  %111 = vadd.xlane.f32.xlu0 %v108
  %v112 = vpop.xlane.xlu0 %111
  %v113 = vadd.f32 %v91, %v110
  %v114 = vadd.f32 %v92, %v112
  %vm115 = vcmask 7168
  %116 = vst.msk [vmem:[#allocation3] sm:$0xff] %vm115, %v113
  %117 = vst.msk [vmem:[#allocation3 + $0x8] sm:$0xff] %vm115, %v114
  %118 = vst.msk [vmem:[#allocation2] sm:$0xff] %vm115, %v81
  %119 = vst.msk [vmem:[#allocation2 + $0x8] sm:$0xff] %vm115, %v82
  // Predicated region
  $region18: #{bert_lm_forward.22} parent=0 // pred_check
    %p120 = pneg %p17
  $region19: #{bert_lm_forward.22} parent=0 // pred_check_branch
    %122 = sbr.rel (%p120) target = $region21
  $region20: #{bert_lm_forward.22} parent=0 // pred_region
    %v123 = vld [vmem:[#allocation2] sm:$0xff]
    %v124 = vld [vmem:[#allocation2 + $0x8] sm:$0xff]
    %v125 = vld [vmem:[#allocation3] sm:$0xff]
    %v126 = vld [vmem:[#allocation3 + $0x8] sm:$0xff]
    %v127 = vlog2.pop %v125
    %v128 = vmul.f32 %v127, 0.6931472
    %v129 = vlog2.pop %v126
    %v130 = vmul.f32 %v129, 0.6931472
    %v131 = vadd.f32 %v123, %v128
    %v132 = vadd.f32 %v124, %v130
    %133 = vst.msk [vmem:[%s4] sm:$0xff] %vm115, %v131
    %134 = vst.msk [vmem:[%s4 + $0x8] sm:$0xff] %vm115, %v132
  $region21: #{bert_lm_forward.22} parent=0 // pred_fallthru
    _
  // Predicated region
  $region22: #{bert_lm_forward.22} parent=0 // pred_check
    _
  $region23: #{bert_lm_forward.22} parent=0 // pred_check_branch
    %136 = sbr.rel (0) target = $region25
  $region24: #{bert_lm_forward.22} parent=0 // pred_region
    _
  $region25: #{bert_lm_forward.22} parent=0 // pred_fallthru
    _
  // Predicated region
  $region26: #{bert_lm_forward.22} parent=0 // pred_check
    _
  $region27: #{bert_lm_forward.22} parent=0 // pred_check_branch
    %138 = sbr.rel (0) target = $region29
  $region28: #{bert_lm_forward.22} parent=0 // pred_region
    _
  $region29: #{bert_lm_forward.22} parent=0 // pred_fallthru
    _
  // Predicated region
  $region30: #{bert_lm_forward.22} parent=0 // pred_check
    _
  $region31: #{bert_lm_forward.22} parent=0 // pred_check_branch
    %140 = sbr.rel (0) target = $region33
  $region32: #{bert_lm_forward.22} parent=0 // pred_region
    _
  $region33: #{bert_lm_forward.22} parent=0 // pred_fallthru
    _
  // Predicated region
  $region34: #{bert_lm_forward.22} parent=0 // pred_check
    _
  $region35: #{bert_lm_forward.22} parent=0 // pred_check_branch
    %142 = sbr.rel (0) target = $region37
  $region36: #{bert_lm_forward.22} parent=0 // pred_region
    _
  $region37: #{bert_lm_forward.22} parent=0 // pred_fallthru
    _

</llo_original>
